<compile_context>
chip_gen: v7x
topology: tpu7x:2x2x1
jax: 0.10.0
libtpu: 0.0.40
codegen_flags: <defaults>
</compile_context>

<pallas_src>
import functools

import jax
import jax.numpy as jnp
import numpy as np
from jax.experimental import pallas as pl
from jax.experimental.pallas import tpu as pltpu


# GEMM operand dtype: bf16 on real TPUs (native MXU, halves HBM traffic of this
# memory-bound network), f32 on any non-TPU / interpret backend whose dot
# implementation does not support BF16 x BF16 = F32.
_ON_TPU = jax.default_backend() == "tpu"
_GEMM_DTYPE = jnp.bfloat16 if _ON_TPU else jnp.float32


# ----------------------------------------------------------------------------
# Pallas kernel: fused multi-operand GEMM + bias + activation epilogue.
#   out[Cout, M_tile] = sum_i W_i @ patchesT_i + bias ; then ReLU or
#   exp(prior_mean + .) for the depth head (EUP slot, essentially free).
# Lane axis of every load/store is the flattened spatial axis (lane-dense).
# ----------------------------------------------------------------------------
def _conv_gemm_kernel(*refs, n_in, act, prior_mean):
    o_ref = refs[-1]
    b_ref = refs[-2]
    w_refs = refs[:n_in]
    x_refs = refs[n_in:2 * n_in]

    acc = jnp.dot(w_refs[0][...], x_refs[0][...],
                  preferred_element_type=jnp.float32)
    for i in range(1, n_in):
        acc = acc + jnp.dot(w_refs[i][...], x_refs[i][...],
                            preferred_element_type=jnp.float32)
    acc = acc + b_ref[...]                     # (Cout, 1) broadcast over lanes
    if act == "relu":
        acc = jnp.maximum(acc, 0.0)
    elif act == "exp":                         # fused depth head
        acc = jnp.exp(prior_mean + acc)
    o_ref[...] = acc.astype(o_ref.dtype)


# ----------------------------------------------------------------------------
# Helpers
# ----------------------------------------------------------------------------
def _round_up(x, m):
    return ((x + m - 1) // m) * m


def _choose_tile_n(mp):
    # Largest lane tile (multiple of 128) that still leaves >= 2 grid steps so
    # the "parallel" axis can shard across v7x's two TensorCores.  Capped at
    # 2048, which keeps double-buffered tiles far under v7x's 64 MiB VMEM.
    for tn in (2048, 1024, 512, 256, 128):
        if mp % tn == 0 and mp // tn >= 2:
            return tn
    return 128


def im2col_T(x, ksize=3, stride=1, pad=1):
    """x: [C, B, H, W] (channel-major) -> patchesT [ksize*ksize*C, B*Ho*Wo].

    K ordering is tap-major / channel-minor (k = (kh*ksize+kw)*C + c), matching
    the [ksize*ksize*Cin, Cout] weight layout.
    # TODO(synk): this still materializes the 9x-expanded patches in HBM; next
    # step is in-kernel tap accumulation (grid reduction over (kh,kw) windows).
    """
    C, B, H, W = x.shape
    xp = jnp.pad(x, ((0, 0), (0, 0), (pad, pad), (pad, pad)))
    Ho = (H + 2 * pad - ksize) // stride + 1
    Wo = (W + 2 * pad - ksize) // stride + 1
    taps = []
    for kh in range(ksize):
        for kw in range(ksize):
            taps.append(
                xp[:, :, kh:kh + stride * (Ho - 1) + 1:stride,
                          kw:kw + stride * (Wo - 1) + 1:stride])
    pt = jnp.concatenate(taps, axis=0)                 # [9*C, B, Ho, Wo]
    return pt.reshape(ksize * ksize * C, B * Ho * Wo), Ho, Wo


def conv3x3(inputs, bias, *, stride=1, act=None, prior_mean=0.0, out_f32=False):
    """Fused 3x3 conv (+bias, +ReLU / exp(prior+.)) on channel-major tensors.

    inputs: list of (x [Cin_i, B, H, W], w [9*Cin_i, Cout]) pairs whose dot
            products are summed inside the kernel (used to fuse the decoder
            skip concatenation without materializing the concat in HBM).
    Returns [Cout, B, Ho, Wo].
    """
    n_in = len(inputs)
    Cout = inputs[0][1].shape[1]
    Cout_p = _round_up(Cout, 8)          # full sublanes -> unmasked stores
    B = inputs[0][0].shape[1]

    pts, wts = [], []
    Ho = Wo = M = None
    for x, w in inputs:
        pt, Ho, Wo = im2col_T(x, stride=stride)
        K, M = pt.shape
        Kp = _round_up(K, 8)
        wt = jnp.pad(jnp.transpose(w), ((0, Cout_p - Cout), (0, Kp - K)))
        wts.append(wt.astype(_GEMM_DTYPE))
        pts.append(jnp.pad(pt, ((0, Kp - K), (0, 0))))

    Mp = _round_up(M, 128)
    tn = _choose_tile_n(Mp)
    pts = [jnp.pad(p, ((0, 0), (0, Mp - M))).astype(_GEMM_DTYPE) for p in pts]
    b2 = jnp.pad(bias, (0, Cout_p - Cout)).reshape(Cout_p, 1).astype(jnp.float32)

    out_dtype = jnp.float32 if out_f32 else _GEMM_DTYPE
    kernel = functools.partial(_conv_gemm_kernel, n_in=n_in, act=act,
                               prior_mean=float(prior_mean))
    in_specs = (
        [pl.BlockSpec(w.shape, lambda j: (0, 0)) for w in wts]             # resident weights
        + [pl.BlockSpec((p.shape[0], tn), lambda j: (0, j)) for p in pts]  # lane-dense tiles
        + [pl.BlockSpec((Cout_p, 1), lambda j: (0, 0))]                    # bias
    )
    out = pl.pallas_call(
        kernel,
        out_shape=jax.ShapeDtypeStruct((Cout_p, Mp), out_dtype),
        grid=(Mp // tn,),
        in_specs=in_specs,
        out_specs=pl.BlockSpec((Cout_p, tn), lambda j: (0, j)),
        compiler_params=pltpu.CompilerParams(
            dimension_semantics=("parallel",)),
    )(*wts, *pts, b2)
    return out[:Cout, :M].reshape(Cout, B, Ho, Wo)


# ----------------------------------------------------------------------------
# UNet core (representative small encoder/decoder; 3 in channels, 1 out channel)
# ----------------------------------------------------------------------------
def init_unet_params(key, in_ch=3, feat=8, out_ch=1):
    def conv_p(k, cin, cout, ksize=3):
        kw_key, _ = jax.random.split(k)
        fan_in = ksize * ksize * cin
        w = jax.random.normal(kw_key, (fan_in, cout), jnp.float32) / np.sqrt(fan_in)
        b = jnp.zeros((cout,), jnp.float32)
        return w, b

    keys = jax.random.split(key, 4)
    p = {}
    p["w1"], p["b1"] = conv_p(keys[0], in_ch, feat)           # enc conv
    p["w2"], p["b2"] = conv_p(keys[1], feat, 2 * feat)        # stride-2 down conv
    p["w3"], p["b3"] = conv_p(keys[2], 3 * feat, feat)        # decoder conv (skip concat)
    p["w4"], p["b4"] = conv_p(keys[3], feat, out_ch)          # output head
    return p


def unet_depth_forward(params, img_cbhw, feat, prior_mean):
    """img_cbhw: [3, B, H, W] channel-major.  Returns depth [1, B, H, W] (f32),
    already exp(prior_mean + scale_1) (the exp is fused into the last GEMM)."""
    # encoder
    e1 = conv3x3([(img_cbhw, params["w1"])], params["b1"], stride=1, act="relu")
    e2 = conv3x3([(e1, params["w2"])], params["b2"], stride=2, act="relu")
    # decoder: nearest-neighbor 2x upsample; skip concat is NOT materialized --
    # the decoder conv consumes (up, e1) as two GEMM operands summed in-kernel.
    up = jnp.repeat(jnp.repeat(e2, 2, axis=2), 2, axis=3)
    # TODO(synk): fold the nearest-neighbor read (row//2, col//2) into the conv
    # index_map to remove this remaining HBM pass as well.
    w3 = params["w3"].reshape(9, 3 * feat, feat)
    w3_up = w3[:, :2 * feat, :].reshape(9 * 2 * feat, feat)
    w3_skip = w3[:, 2 * feat:, :].reshape(9 * feat, feat)
    d1 = conv3x3([(up, w3_up), (e1, w3_skip)], params["b3"], stride=1, act="relu")
    # output head with fused depth = exp(prior_mean + feat['scale_1'])
    depth = conv3x3([(d1, params["w4"])], params["b4"], stride=1, act="exp",
                    prior_mean=prior_mean, out_f32=True)
    return depth                                              # [1, B, H, W]


# ----------------------------------------------------------------------------
# MonoDepth module (test_forward path of the PyTorch reference)
# ----------------------------------------------------------------------------
def preprocess_sum_avg(sum_pred: np.ndarray, num_pred: np.ndarray) -> float:
    return float(np.sum(sum_pred) / np.sum(num_pred))


class MonoDepthPallas:
    def __init__(self, key, feat=8, output_channel=1, max_depth=50.0):
        self.max_depth = max_depth
        self.output_channel = output_channel
        self.feat = feat
        # Deterministic synthetic stand-in for the precomputed log-depth stats.
        # TODO(synk): the reference loads these from .npy files on disk.
        sum_precompute = np.full((64,), 3.0, dtype=np.float32)   # sum of log-depths
        num_precompute = np.full((64,), 1.0, dtype=np.float32)   # pixel counts
        self.prior_mean = preprocess_sum_avg(sum_precompute, num_precompute)
        self.params = init_unet_params(key, in_ch=3, feat=feat, out_ch=output_channel)
        self._fwd = jax.jit(functools.partial(
            unet_depth_forward, feat=feat, prior_mean=self.prior_mean))

    def test_forward(self, img_batch_nchw, P2):
        del P2  # calibration accepted for API parity; unused by the synthetic core
        img_cbhw = jnp.transpose(img_batch_nchw, (1, 0, 2, 3))   # NCHW -> [C,B,H,W]
        depth_cbhw = self._fwd(self.params, img_cbhw)            # [1, B, H, W]
        depth = jnp.transpose(depth_cbhw, (1, 0, 2, 3))          # -> [B, 1, H, W]
        return {"target": depth}

    def __call__(self, inputs):
        if isinstance(inputs, (list, tuple)) and len(inputs) == 3:
            # TODO(synk): training_forward (SI loss + MonodepthLoss smooth loss +
            # adaptive_max_pool2d GT reshaping) is not implemented.
            raise NotImplementedError("training path not implemented")
        img_batch, K = inputs
        return self.test_forward(img_batch, K)


# ----------------------------------------------------------------------------
if __name__ == "__main__":
    key = jax.random.PRNGKey(0)
    k_param, k_img = jax.random.split(key)

    B, C, H, W = 2, 3, 16, 16
    img_batch = jax.random.normal(k_img, (B, C, H, W), jnp.float32)
    P2 = jnp.tile(jnp.eye(3, dtype=jnp.float32)[None], (B, 1, 1))

    model = MonoDepthPallas(k_param, feat=8, output_channel=1)
    out = model((img_batch, P2))
    depth = jax.block_until_ready(out["target"])

    assert depth.shape == (B, 1, H, W), depth.shape
    assert bool(jnp.all(depth > 0)), "depth prediction must be strictly positive"
    assert bool(jnp.all(jnp.isfinite(depth)))

    print("KERNEL_OK")
</pallas_src>

<mosaic_0001>
module attributes {stable_mosaic.version = 11 : i64} {
  func.func @_conv_gemm_kernel(%arg0: i32, %arg1: memref<8x32xf32, #tpu.memory_space<vmem>>, %arg2: memref<32x256xf32, #tpu.memory_space<vmem>>, %arg3: memref<8x1xf32, #tpu.memory_space<vmem>>, %arg4: memref<8x256xf32, #tpu.memory_space<vmem>>) attributes {dimension_semantics = [#tpu.dimension_semantics<parallel>], iteration_bounds = array<i64: 2>, scalar_prefetch = 0 : i64, scratch_operands = 0 : i64, tpu.core_type = #tpu.core_type<tc>, window_params = [{pipeline_mode = #tpu.pipeline_mode<synchronous>, transform_indices = @transform_0, window_bounds = array<i64: 8, 32>}, {transform_indices = @transform_1, window_bounds = array<i64: 32, 256>}, {pipeline_mode = #tpu.pipeline_mode<synchronous>, transform_indices = @transform_2, window_bounds = array<i64: 8, 1>}, {transform_indices = @transform_3, window_bounds = array<i64: 8, 256>}]} {
    %c0 = arith.constant 0 : index
    %c0_0 = arith.constant 0 : index
    %0 = vector.load %arg1[%c0, %c0_0] : memref<8x32xf32, #tpu.memory_space<vmem>>, vector<8x32xf32>
    %c0_1 = arith.constant 0 : index
    %c0_2 = arith.constant 0 : index
    %1 = vector.load %arg2[%c0_1, %c0_2] : memref<32x256xf32, #tpu.memory_space<vmem>>, vector<32x256xf32>
    %cst = arith.constant dense<0.000000e+00> : vector<8x256xf32>
    %2 = tpu.matmul %0, %1, %cst {dimension_numbers = #tpu.dot_dimension_numbers<[1], [0], [0], [1], [0, 0, 1, 1], [], []>} : vector<8x32xf32>, vector<32x256xf32>, vector<8x256xf32> -> vector<8x256xf32>
    %c0_3 = arith.constant 0 : index
    %c0_4 = arith.constant 0 : index
    %3 = vector.load %arg3[%c0_3, %c0_4] : memref<8x1xf32, #tpu.memory_space<vmem>>, vector<8x1xf32>
    %4 = vector.broadcast %3 : vector<8x1xf32> to vector<8x256xf32>
    %5 = arith.addf %2, %4 : vector<8x256xf32>
    %cst_5 = arith.constant 0.000000e+00 : f32
    %6 = vector.broadcast %cst_5 : f32 to vector<8x256xf32>
    %7 = arith.maximumf %5, %6 : vector<8x256xf32>
    %c0_6 = arith.constant 0 : index
    %c0_7 = arith.constant 0 : index
    %8 = vector.load %arg4[%c0_6, %c0_7] : memref<8x256xf32, #tpu.memory_space<vmem>>, vector<8x256xf32>
    tpu.vector_store %arg4[%c0_6, %c0_7], %7 {strides = array<i32>} : memref<8x256xf32, #tpu.memory_space<vmem>>, vector<8x256xf32>,
    return
  }
  func.func @transform_0(%arg0: i32) -> (i32, i32) {
    %c0_i32 = arith.constant 0 : i32
    %c0_i32_0 = arith.constant 0 : i32
    %c0_i32_1 = arith.constant 0 : i32
    return %c0_i32, %c0_i32_0 : i32, i32
  }
  func.func @transform_1(%arg0: i32) -> (i32, i32) {
    %c0_i32 = arith.constant 0 : i32
    %c0_i32_0 = arith.constant 0 : i32
    return %c0_i32, %arg0 : i32, i32
  }
  func.func @transform_2(%arg0: i32) -> (i32, i32) {
    %c0_i32 = arith.constant 0 : i32
    %c0_i32_0 = arith.constant 0 : i32
    %c0_i32_1 = arith.constant 0 : i32
    return %c0_i32, %c0_i32_0 : i32, i32
  }
  func.func @transform_3(%arg0: i32) -> (i32, i32) {
    %c0_i32 = arith.constant 0 : i32
    %c0_i32_0 = arith.constant 0 : i32
    return %c0_i32, %arg0 : i32, i32
  }
}

module attributes {stable_mosaic.version = 11 : i64} {
  func.func @_conv_gemm_kernel(%arg0: i32, %arg1: memref<16x72xf32, #tpu.memory_space<vmem>>, %arg2: memref<72x128xf32, #tpu.memory_space<vmem>>, %arg3: memref<16x1xf32, #tpu.memory_space<vmem>>, %arg4: memref<16x128xf32, #tpu.memory_space<vmem>>) attributes {dimension_semantics = [#tpu.dimension_semantics<parallel>], iteration_bounds = array<i64: 1>, scalar_prefetch = 0 : i64, scratch_operands = 0 : i64, tpu.core_type = #tpu.core_type<tc>, window_params = [{pipeline_mode = #tpu.pipeline_mode<synchronous>, transform_indices = @transform_0, window_bounds = array<i64: 16, 72>}, {transform_indices = @transform_1, window_bounds = array<i64: 72, 128>}, {pipeline_mode = #tpu.pipeline_mode<synchronous>, transform_indices = @transform_2, window_bounds = array<i64: 16, 1>}, {transform_indices = @transform_3, window_bounds = array<i64: 16, 128>}]} {
    %c0 = arith.constant 0 : index
    %c0_0 = arith.constant 0 : index
    %0 = vector.load %arg1[%c0, %c0_0] : memref<16x72xf32, #tpu.memory_space<vmem>>, vector<16x72xf32>
    %c0_1 = arith.constant 0 : index
    %c0_2 = arith.constant 0 : index
    %1 = vector.load %arg2[%c0_1, %c0_2] : memref<72x128xf32, #tpu.memory_space<vmem>>, vector<72x128xf32>
    %cst = arith.constant dense<0.000000e+00> : vector<16x128xf32>
    %2 = tpu.matmul %0, %1, %cst {dimension_numbers = #tpu.dot_dimension_numbers<[1], [0], [0], [1], [0, 0, 1, 1], [], []>} : vector<16x72xf32>, vector<72x128xf32>, vector<16x128xf32> -> vector<16x128xf32>
    %c0_3 = arith.constant 0 : index
    %c0_4 = arith.constant 0 : index
    %3 = vector.load %arg3[%c0_3, %c0_4] : memref<16x1xf32, #tpu.memory_space<vmem>>, vector<16x1xf32>
    %4 = vector.broadcast %3 : vector<16x1xf32> to vector<16x128xf32>
    %5 = arith.addf %2, %4 : vector<16x128xf32>
    %cst_5 = arith.constant 0.000000e+00 : f32
    %6 = vector.broadcast %cst_5 : f32 to vector<16x128xf32>
    %7 = arith.maximumf %5, %6 : vector<16x128xf32>
    %c0_6 = arith.constant 0 : index
    %c0_7 = arith.constant 0 : index
    %8 = vector.load %arg4[%c0_6, %c0_7] : memref<16x128xf32, #tpu.memory_space<vmem>>, vector<16x128xf32>
    tpu.vector_store %arg4[%c0_6, %c0_7], %7 {strides = array<i32>} : memref<16x128xf32, #tpu.memory_space<vmem>>, vector<16x128xf32>,
    return
  }
  func.func @transform_0(%arg0: i32) -> (i32, i32) {
    %c0_i32 = arith.constant 0 : i32
    %c0_i32_0 = arith.constant 0 : i32
    %c0_i32_1 = arith.constant 0 : i32
    return %c0_i32, %c0_i32_0 : i32, i32
  }
  func.func @transform_1(%arg0: i32) -> (i32, i32) {
    %c0_i32 = arith.constant 0 : i32
    %c0_i32_0 = arith.constant 0 : i32
    return %c0_i32, %arg0 : i32, i32
  }
  func.func @transform_2(%arg0: i32) -> (i32, i32) {
    %c0_i32 = arith.constant 0 : i32
    %c0_i32_0 = arith.constant 0 : i32
    %c0_i32_1 = arith.constant 0 : i32
    return %c0_i32, %c0_i32_0 : i32, i32
  }
  func.func @transform_3(%arg0: i32) -> (i32, i32) {
    %c0_i32 = arith.constant 0 : i32
    %c0_i32_0 = arith.constant 0 : i32
    return %c0_i32, %arg0 : i32, i32
  }
}

module attributes {stable_mosaic.version = 11 : i64} {
  func.func @_conv_gemm_kernel(%arg0: i32, %arg1: memref<8x144xf32, #tpu.memory_space<vmem>>, %arg2: memref<8x72xf32, #tpu.memory_space<vmem>>, %arg3: memref<144x256xf32, #tpu.memory_space<vmem>>, %arg4: memref<72x256xf32, #tpu.memory_space<vmem>>, %arg5: memref<8x1xf32, #tpu.memory_space<vmem>>, %arg6: memref<8x256xf32, #tpu.memory_space<vmem>>) attributes {dimension_semantics = [#tpu.dimension_semantics<parallel>], iteration_bounds = array<i64: 2>, scalar_prefetch = 0 : i64, scratch_operands = 0 : i64, tpu.core_type = #tpu.core_type<tc>, window_params = [{pipeline_mode = #tpu.pipeline_mode<synchronous>, transform_indices = @transform_0, window_bounds = array<i64: 8, 144>}, {pipeline_mode = #tpu.pipeline_mode<synchronous>, transform_indices = @transform_1, window_bounds = array<i64: 8, 72>}, {transform_indices = @transform_2, window_bounds = array<i64: 144, 256>}, {transform_indices = @transform_3, window_bounds = array<i64: 72, 256>}, {pipeline_mode = #tpu.pipeline_mode<synchronous>, transform_indices = @transform_4, window_bounds = array<i64: 8, 1>}, {transform_indices = @transform_5, window_bounds = array<i64: 8, 256>}]} {
    %c0 = arith.constant 0 : index
    %c0_0 = arith.constant 0 : index
    %0 = vector.load %arg1[%c0, %c0_0] : memref<8x144xf32, #tpu.memory_space<vmem>>, vector<8x144xf32>
    %c0_1 = arith.constant 0 : index
    %c0_2 = arith.constant 0 : index
    %1 = vector.load %arg3[%c0_1, %c0_2] : memref<144x256xf32, #tpu.memory_space<vmem>>, vector<144x256xf32>
    %cst = arith.constant dense<0.000000e+00> : vector<8x256xf32>
    %2 = tpu.matmul %0, %1, %cst {dimension_numbers = #tpu.dot_dimension_numbers<[1], [0], [0], [1], [0, 0, 1, 1], [], []>} : vector<8x144xf32>, vector<144x256xf32>, vector<8x256xf32> -> vector<8x256xf32>
    %c0_3 = arith.constant 0 : index
    %c0_4 = arith.constant 0 : index
    %3 = vector.load %arg2[%c0_3, %c0_4] : memref<8x72xf32, #tpu.memory_space<vmem>>, vector<8x72xf32>
    %c0_5 = arith.constant 0 : index
    %c0_6 = arith.constant 0 : index
    %4 = vector.load %arg4[%c0_5, %c0_6] : memref<72x256xf32, #tpu.memory_space<vmem>>, vector<72x256xf32>
    %cst_7 = arith.constant dense<0.000000e+00> : vector<8x256xf32>
    %5 = tpu.matmul %3, %4, %cst_7 {dimension_numbers = #tpu.dot_dimension_numbers<[1], [0], [0], [1], [0, 0, 1, 1], [], []>} : vector<8x72xf32>, vector<72x256xf32>, vector<8x256xf32> -> vector<8x256xf32>
    %6 = arith.addf %2, %5 : vector<8x256xf32>
    %c0_8 = arith.constant 0 : index
    %c0_9 = arith.constant 0 : index
    %7 = vector.load %arg5[%c0_8, %c0_9] : memref<8x1xf32, #tpu.memory_space<vmem>>, vector<8x1xf32>
    %8 = vector.broadcast %7 : vector<8x1xf32> to vector<8x256xf32>
    %9 = arith.addf %6, %8 : vector<8x256xf32>
    %cst_10 = arith.constant 0.000000e+00 : f32
    %10 = vector.broadcast %cst_10 : f32 to vector<8x256xf32>
    %11 = arith.maximumf %9, %10 : vector<8x256xf32>
    %c0_11 = arith.constant 0 : index
    %c0_12 = arith.constant 0 : index
    %12 = vector.load %arg6[%c0_11, %c0_12] : memref<8x256xf32, #tpu.memory_space<vmem>>, vector<8x256xf32>
    tpu.vector_store %arg6[%c0_11, %c0_12], %11 {strides = array<i32>} : memref<8x256xf32, #tpu.memory_space<vmem>>, vector<8x256xf32>,
    return
  }
  func.func @transform_0(%arg0: i32) -> (i32, i32) {
    %c0_i32 = arith.constant 0 : i32
    %c0_i32_0 = arith.constant 0 : i32
    %c0_i32_1 = arith.constant 0 : i32
    return %c0_i32, %c0_i32_0 : i32, i32
  }
  func.func @transform_1(%arg0: i32) -> (i32, i32) {
    %c0_i32 = arith.constant 0 : i32
    %c0_i32_0 = arith.constant 0 : i32
    %c0_i32_1 = arith.constant 0 : i32
    return %c0_i32, %c0_i32_0 : i32, i32
  }
  func.func @transform_2(%arg0: i32) -> (i32, i32) {
    %c0_i32 = arith.constant 0 : i32
    %c0_i32_0 = arith.constant 0 : i32
    return %c0_i32, %arg0 : i32, i32
  }
  func.func @transform_3(%arg0: i32) -> (i32, i32) {
    %c0_i32 = arith.constant 0 : i32
    %c0_i32_0 = arith.constant 0 : i32
    return %c0_i32, %arg0 : i32, i32
  }
  func.func @transform_4(%arg0: i32) -> (i32, i32) {
    %c0_i32 = arith.constant 0 : i32
    %c0_i32_0 = arith.constant 0 : i32
    %c0_i32_1 = arith.constant 0 : i32
    return %c0_i32, %c0_i32_0 : i32, i32
  }
  func.func @transform_5(%arg0: i32) -> (i32, i32) {
    %c0_i32 = arith.constant 0 : i32
    %c0_i32_0 = arith.constant 0 : i32
    return %c0_i32, %arg0 : i32, i32
  }
}

module attributes {stable_mosaic.version = 11 : i64} {
  func.func @_conv_gemm_kernel(%arg0: i32, %arg1: memref<8x72xf32, #tpu.memory_space<vmem>>, %arg2: memref<72x256xf32, #tpu.memory_space<vmem>>, %arg3: memref<8x1xf32, #tpu.memory_space<vmem>>, %arg4: memref<8x256xf32, #tpu.memory_space<vmem>>) attributes {dimension_semantics = [#tpu.dimension_semantics<parallel>], iteration_bounds = array<i64: 2>, scalar_prefetch = 0 : i64, scratch_operands = 0 : i64, tpu.core_type = #tpu.core_type<tc>, window_params = [{pipeline_mode = #tpu.pipeline_mode<synchronous>, transform_indices = @transform_0, window_bounds = array<i64: 8, 72>}, {transform_indices = @transform_1, window_bounds = array<i64: 72, 256>}, {pipeline_mode = #tpu.pipeline_mode<synchronous>, transform_indices = @transform_2, window_bounds = array<i64: 8, 1>}, {transform_indices = @transform_3, window_bounds = array<i64: 8, 256>}]} {
    %c0 = arith.constant 0 : index
    %c0_0 = arith.constant 0 : index
    %0 = vector.load %arg1[%c0, %c0_0] : memref<8x72xf32, #tpu.memory_space<vmem>>, vector<8x72xf32>
    %c0_1 = arith.constant 0 : index
    %c0_2 = arith.constant 0 : index
    %1 = vector.load %arg2[%c0_1, %c0_2] : memref<72x256xf32, #tpu.memory_space<vmem>>, vector<72x256xf32>
    %cst = arith.constant dense<0.000000e+00> : vector<8x256xf32>
    %2 = tpu.matmul %0, %1, %cst {dimension_numbers = #tpu.dot_dimension_numbers<[1], [0], [0], [1], [0, 0, 1, 1], [], []>} : vector<8x72xf32>, vector<72x256xf32>, vector<8x256xf32> -> vector<8x256xf32>
    %c0_3 = arith.constant 0 : index
    %c0_4 = arith.constant 0 : index
    %3 = vector.load %arg3[%c0_3, %c0_4] : memref<8x1xf32, #tpu.memory_space<vmem>>, vector<8x1xf32>
    %4 = vector.broadcast %3 : vector<8x1xf32> to vector<8x256xf32>
    %5 = arith.addf %2, %4 : vector<8x256xf32>
    %cst_5 = arith.constant 3.000000e+00 : f32
    %6 = vector.broadcast %cst_5 : f32 to vector<8x256xf32>
    %7 = arith.addf %6, %5 : vector<8x256xf32>
    %8 = math.exp %7 : vector<8x256xf32>
    %c0_6 = arith.constant 0 : index
    %c0_7 = arith.constant 0 : index
    %9 = vector.load %arg4[%c0_6, %c0_7] : memref<8x256xf32, #tpu.memory_space<vmem>>, vector<8x256xf32>
    tpu.vector_store %arg4[%c0_6, %c0_7], %8 {strides = array<i32>} : memref<8x256xf32, #tpu.memory_space<vmem>>, vector<8x256xf32>,
    return
  }
  func.func @transform_0(%arg0: i32) -> (i32, i32) {
    %c0_i32 = arith.constant 0 : i32
    %c0_i32_0 = arith.constant 0 : i32
    %c0_i32_1 = arith.constant 0 : i32
    return %c0_i32, %c0_i32_0 : i32, i32
  }
  func.func @transform_1(%arg0: i32) -> (i32, i32) {
    %c0_i32 = arith.constant 0 : i32
    %c0_i32_0 = arith.constant 0 : i32
    return %c0_i32, %arg0 : i32, i32
  }
  func.func @transform_2(%arg0: i32) -> (i32, i32) {
    %c0_i32 = arith.constant 0 : i32
    %c0_i32_0 = arith.constant 0 : i32
    %c0_i32_1 = arith.constant 0 : i32
    return %c0_i32, %c0_i32_0 : i32, i32
  }
  func.func @transform_3(%arg0: i32) -> (i32, i32) {
    %c0_i32 = arith.constant 0 : i32
    %c0_i32_0 = arith.constant 0 : i32
    return %c0_i32, %arg0 : i32, i32
  }
}

</mosaic_0001>

<llo_original>
// kernel: unet_depth_forward.4
$region0: #{unet_depth_forward.4}
  #allocation0 [shape = 'u32[]', space=smem, size = 0x4, offset = 0x4, fixed_abs, tag = 'smem constant byte address 0x4 - core index']
  #allocation1 [shape = 'u32[144,128]{1,0:T(1,128)}', space=vmem, size = 0x12000, scoped, tag = 'internal scratch']
  %s0 = inlined_call_operand.vmem [shape: f32[8,32], index: 0, kind: input, shape index: {}]
  %s1 = inlined_call_operand.vmem [shape: f32[32,512], index: 1, kind: input, shape index: {}]
  %s2 = inlined_call_operand.vmem [shape: f32[8,1], index: 2, kind: input, shape index: {}]
  %s3 = inlined_call_operand.vmem [shape: f32[8,512], index: 3, kind: output, shape index: {}]
  %s4 = sld [smem:[#allocation0]]
  $region68: #{unet_depth_forward.4} parent=0
    _
  %s6 = ssub.s32 1, %s4
  %s7 = scalar_select 0, %s6, %s4
  $region1: #{unet_depth_forward.4} parent=0
    #allocation2 [shape = 'u8[65536]{0}', space=vmem, size = 0x10000, scoped, tag = 'input window, operand 1']
    loop: start=0, step=1, limit=4
    $region2: #{unet_depth_forward.4} parent=1 // loop_pre_header
      _
    $region3: #{unet_depth_forward.4} parent=1 // loop_header
      %s9 = sphi 0, %s13
      %p10 = scmp.ge.s32.totalorder %s9, 4
      %s17 = sphi 0, %s17
      %s19 = sphi 0, %s17
      %s20 = sphi 0, %s19
      %s34 = sphi 0, %s20
      %s40 = sphi 0, %s42
      %s43 = sphi 0, %s40
      %s44 = sphi 0, %s43
      %s60 = sphi 0, %s44
      %s64 = sphi 0, %s64
      %s66 = sphi 0, %s64
      %s67 = sphi 0, %s66
      %s81 = sphi 0, %s67
      %s87 = sphi 0, %s89
      %s90 = sphi 0, %s87
      %s91 = sphi 0, %s90
      %s107 = sphi 0, %s91
    $region4: #{unet_depth_forward.4} parent=1 // loop_header_branch
      %12 = sbr.rel (%p10) target = $region8
    $region5: #{unet_depth_forward.4} parent=1 // loop_body
      %s14 = ssub.s32 %s9, 1
      %s15 = ssub.s32 %s9, 2
      %s16 = sadd.s32 %s9, 1
      %s18 = sadd.s32 %s17, 1
      %p21 = scmp.eq.s32.totalorder %s9, 1
      %p22 = scmp.ne.s32.totalorder %s17, %s19
      %p23 = scmp.eq.s32.totalorder %s9, 0
      %p24 = por %p22, %p23
      %p25 = scmp.ne.s32.totalorder %s17, %s19
      %p26 = scmp.eq.s32.totalorder %s14, 1
      %p27 = por %p25, %p26
      %p28 = scmp.ne.s32.totalorder %s19, %s20
      %p29 = scmp.eq.s32.totalorder %s14, 0
      %p30 = por %p28, %p29
      %p31 = scmp.ne.s32.totalorder %s19, %s20
      %p32 = scmp.eq.s32.totalorder %s15, 1
      %p33 = por %p31, %p32
      %p35 = scmp.ne.s32.totalorder %s20, %s34
      %p36 = scmp.eq.s32.totalorder %s15, 0
      %p37 = por %p35, %p36
      %s38 = ssub.s32 %s9, %s16
      %p39 = scmp.eq.s32.totalorder %s38, 0
      %s41 = sadd.s32 %s40, 1
      %s42 = scalar_select %p39, %s40, %s41
      %p45 = pneg %p39
      %p46 = scmp.eq.s32.totalorder %s9, 1
      %p47 = por %p45, %p46
      %p48 = scmp.ne.s32.totalorder %s40, %s43
      %p49 = scmp.eq.s32.totalorder %s9, 0
      %p50 = por %p48, %p49
      %p51 = scmp.ne.s32.totalorder %s40, %s43
      %p52 = scmp.eq.s32.totalorder %s14, 1
      %p53 = por %p51, %p52
      %p54 = scmp.ne.s32.totalorder %s43, %s44
      %p55 = scmp.eq.s32.totalorder %s14, 0
      %p56 = por %p54, %p55
      %p57 = scmp.ne.s32.totalorder %s43, %s44
      %p58 = scmp.eq.s32.totalorder %s15, 1
      %p59 = por %p57, %p58
      %p61 = scmp.ne.s32.totalorder %s44, %s60
      %p62 = scmp.eq.s32.totalorder %s15, 0
      %p63 = por %p61, %p62
      %s65 = sadd.s32 %s64, 1
      %p68 = scmp.eq.s32.totalorder %s9, 1
      %p69 = scmp.ne.s32.totalorder %s64, %s66
      %p70 = scmp.eq.s32.totalorder %s9, 0
      %p71 = por %p69, %p70
      %p72 = scmp.ne.s32.totalorder %s64, %s66
      %p73 = scmp.eq.s32.totalorder %s14, 1
      %p74 = por %p72, %p73
      %p75 = scmp.ne.s32.totalorder %s66, %s67
      %p76 = scmp.eq.s32.totalorder %s14, 0
      %p77 = por %p75, %p76
      %p78 = scmp.ne.s32.totalorder %s66, %s67
      %p79 = scmp.eq.s32.totalorder %s15, 1
      %p80 = por %p78, %p79
      %p82 = scmp.ne.s32.totalorder %s67, %s81
      %p83 = scmp.eq.s32.totalorder %s15, 0
      %p84 = por %p82, %p83
      %s85 = ssub.s32 %s9, %s16
      %p86 = scmp.eq.s32.totalorder %s85, 0
      %s88 = sadd.s32 %s87, 1
      %s89 = scalar_select %p86, %s87, %s88
      %p92 = pneg %p86
      %p93 = scmp.eq.s32.totalorder %s9, 1
      %p94 = por %p92, %p93
      %p95 = scmp.ne.s32.totalorder %s87, %s90
      %p96 = scmp.eq.s32.totalorder %s9, 0
      %p97 = por %p95, %p96
      %p98 = scmp.ne.s32.totalorder %s87, %s90
      %p99 = scmp.eq.s32.totalorder %s14, 1
      %p100 = por %p98, %p99
      %p101 = scmp.ne.s32.totalorder %s90, %s91
      %p102 = scmp.eq.s32.totalorder %s14, 0
      %p103 = por %p101, %p102
      %p104 = scmp.ne.s32.totalorder %s90, %s91
      %p105 = scmp.eq.s32.totalorder %s15, 1
      %p106 = por %p104, %p105
      %p108 = scmp.ne.s32.totalorder %s91, %s107
      %p109 = scmp.eq.s32.totalorder %s15, 0
      %p110 = por %p108, %p109
      %p111 = scmp.le.s32.totalorder 1, %s9
      %p112 = scmp.lt.s32.totalorder %s9, 3
      %p113 = pnand %p111, %p112
      %p114 = pneg %p113
      // Predicated region
      $region9: #{unet_depth_forward.4} parent=5 // pred_check
        _
      $region10: #{unet_depth_forward.4} parent=5 // pred_check_branch
        %116 = sbr.rel (%p113) target = $region12
      $region11: #{unet_depth_forward.4} parent=5 // pred_region
        %s117 = ssub.s32 %s9, 1
        // Predicated region
        $region13: #{unet_depth_forward.4} parent=11 // pred_check
          %p118 = pneg %p30
        $region14: #{unet_depth_forward.4} parent=11 // pred_check_branch
          %120 = sbr.rel (%p118) target = $region16
        $region15: #{unet_depth_forward.4} parent=11 // pred_region
          _
        $region16: #{unet_depth_forward.4} parent=11 // pred_fallthru
          _
        // Predicated region
        $region17: #{unet_depth_forward.4} parent=11 // pred_check
          %p121 = pneg %p77
        $region18: #{unet_depth_forward.4} parent=11 // pred_check_branch
          %123 = sbr.rel (%p121) target = $region20
        $region19: #{unet_depth_forward.4} parent=11 // pred_region
          _
        $region20: #{unet_depth_forward.4} parent=11 // pred_fallthru
          _
      $region12: #{unet_depth_forward.4} parent=5 // pred_fallthru
        _
      %p124 = scmp.lt.s32.totalorder %s9, 2
      // Predicated region
      $region21: #{unet_depth_forward.4} parent=5 // pred_check
        %p125 = pneg %p124
      $region22: #{unet_depth_forward.4} parent=5 // pred_check_branch
        %127 = sbr.rel (%p125) target = $region24
      $region23: #{unet_depth_forward.4} parent=5 // pred_region
        // Predicated region
        $region25: #{unet_depth_forward.4} parent=23 // pred_check
          %p128 = pneg %p50
        $region26: #{unet_depth_forward.4} parent=23 // pred_check_branch
          %130 = sbr.rel (%p128) target = $region28
        $region27: #{unet_depth_forward.4} parent=23 // pred_region
          %s131 = sand.u32 %s40, 1
          %s132 = sand.u32 %s40, 1
          %s133 = smul.addr %s132, 64
          %s134 = scalar_lea.vmem [#allocation2], %s133
          %s135 = smul.u32 2, %s9
          %s136 = smul.addr %s135, 8
          %s137 = scalar_lea.vmem %s1, %s136
          // Predicated region
          $region29: #{unet_depth_forward.4} parent=27 // pred_check
            _
          $region30: #{unet_depth_forward.4} parent=27 // pred_check_branch
            %139 = sbr.rel (0) target = $region32
          $region31: #{unet_depth_forward.4} parent=27 // pred_region
            // Predicated region
            $region33: #{unet_depth_forward.4} parent=31 // pred_check
              _
            $region34: #{unet_depth_forward.4} parent=31 // pred_check_branch
              %141 = sbr.rel (0) target = $region36
            $region35: #{unet_depth_forward.4} parent=31 // pred_region
              loop: start=0, step=1, limit=1
              $region37: #{unet_depth_forward.4} parent=35 // loop_pre_header
                _
              $region38: #{unet_depth_forward.4} parent=35 // loop_header
                %s143 = sphi 0, %s147
                %p144 = scmp.ge.s32.totalorder %s143, 1
                %s148 = sphi %s137, %s137
                %s149 = sphi %s134, %s134
              $region39: #{unet_depth_forward.4} parent=35 // loop_header_branch
                %146 = sbr.rel (%p144) target = $region43
              $region40: #{unet_depth_forward.4} parent=35 // loop_body
                %v150 = vld [vmem:[%s148] sm:$0xff]
                %151 = vst [vmem:[%s149] sm:$0xff] %v150
                %v152 = vld [vmem:[%s148 + $0x8] sm:$0xff]
                %153 = vst [vmem:[%s149 + $0x8] sm:$0xff] %v152
                %v154 = vld [vmem:[%s148 + $0x20] sm:$0xff]
                %155 = vst [vmem:[%s149 + $0x10] sm:$0xff] %v154
                %v156 = vld [vmem:[%s148 + $0x28] sm:$0xff]
                %157 = vst [vmem:[%s149 + $0x18] sm:$0xff] %v156
                %v158 = vld [vmem:[%s148 + $0x40] sm:$0xff]
                %159 = vst [vmem:[%s149 + $0x20] sm:$0xff] %v158
                %v160 = vld [vmem:[%s148 + $0x48] sm:$0xff]
                %161 = vst [vmem:[%s149 + $0x28] sm:$0xff] %v160
                %v162 = vld [vmem:[%s148 + $0x60] sm:$0xff]
                %163 = vst [vmem:[%s149 + $0x30] sm:$0xff] %v162
                %v164 = vld [vmem:[%s148 + $0x68] sm:$0xff]
                %165 = vst [vmem:[%s149 + $0x38] sm:$0xff] %v164
              $region41: #{unet_depth_forward.4} parent=35 // loop_footer
                %s147 = sadd.s32 1, %s143
              $region42: #{unet_depth_forward.4} parent=35 // loop_footer_branch
                %142 = sbr.rel target = $region38
              $region43: #{unet_depth_forward.4} parent=35 // loop_exit
                _
            $region36: #{unet_depth_forward.4} parent=31 // pred_fallthru
              _
            // Predicated region
            $region44: #{unet_depth_forward.4} parent=31 // pred_check
              _
            $region45: #{unet_depth_forward.4} parent=31 // pred_check_branch
              %167 = sbr.rel target = $region47
            $region46: #{unet_depth_forward.4} parent=31 // pred_region
              _
            $region47: #{unet_depth_forward.4} parent=31 // pred_fallthru
              _
          $region32: #{unet_depth_forward.4} parent=27 // pred_fallthru
            _
          %168 = vnop
        $region28: #{unet_depth_forward.4} parent=23 // pred_fallthru
          _
      $region24: #{unet_depth_forward.4} parent=5 // pred_fallthru
        _
      %p169 = scmp.le.s32.totalorder 1, %s9
      %p170 = scmp.lt.s32.totalorder %s9, 3
      %p171 = pnand %p169, %p170
      %p172 = pneg %p171
      // Predicated region
      $region48: #{unet_depth_forward.4} parent=5 // pred_check
        _
      $region49: #{unet_depth_forward.4} parent=5 // pred_check_branch
        %174 = sbr.rel (%p171) target = $region51
      $region50: #{unet_depth_forward.4} parent=5 // pred_region
        %s175 = ssub.s32 %s9, 1
        %s176 = sand.u32 %s43, 1
        %s177 = sand.u32 %s43, 1
        %s178 = smul.addr %s177, 64
        %s179 = scalar_lea.vmem [#allocation2], %s178
        // Predicated region
        $region52: #{unet_depth_forward.4} parent=50 // pred_check
          %p180 = pneg %p56
        $region53: #{unet_depth_forward.4} parent=50 // pred_check_branch
          %182 = sbr.rel (%p180) target = $region55
        $region54: #{unet_depth_forward.4} parent=50 // pred_region
          _
        $region55: #{unet_depth_forward.4} parent=50 // pred_fallthru
          _
        %p183 = pneg %p30
        %p184 = pneg %p27
        %s185 = sand.u32 %s43, 1
        %s186 = sand.u32 %s43, 1
        %s187 = smul.addr %s186, 64
        %s188 = scalar_lea.vmem [#allocation2], %s187
        %p189 = pneg %p56
        %p190 = pneg %p53
        %p191 = pneg %p77
        %p192 = pneg %p74
        %p193 = pneg %p103
        %p194 = pneg %p100
        %s195 = smul.u32 2, %s14
        %p196 = scmp.lt.s32.totalorder %s195, 3
        %s197 = scalar_select %p196, %s195, 3
        %s198 = smul.addr %s197, 8
        %s199 = scalar_lea.vmem %s3, %s198
        %s200 = smul.u32 2, %s14
        %s201 = smul.u32 2, %s14
        %p202 = scmp.lt.s32.totalorder %s201, 3
        %s203 = scalar_select %p202, %s201, 3
        %s204 = smul.addr %s203, 8
        %s205 = scalar_lea.vmem %s3, %s204
        %s206 = smul.u32 2, %s14
        %v207 = vld [vmem:[%s0] sm:$0xff]
        %v208 = vld [vmem:[%s179] sm:$0xff]
        %v209 = vld [vmem:[%s179 + $0x8] sm:$0xff]
        %v210 = vld [vmem:[%s179 + $0x10] sm:$0xff]
        %v211 = vld [vmem:[%s179 + $0x18] sm:$0xff]
        %v212 = vld [vmem:[%s179 + $0x20] sm:$0xff]
        %v213 = vld [vmem:[%s179 + $0x28] sm:$0xff]
        %v214 = vld [vmem:[%s179 + $0x30] sm:$0xff]
        %v215 = vld [vmem:[%s179 + $0x38] sm:$0xff]
        %v216 = vld [vmem:[%s2] sm:$0xff]
        %218 = vset.pattern.permute.xlu0 0
        %219 = vperm.xlu0 %218, %v216
        %v220 = vpop.permute.xlu0 %219
        %vm222 = vcmask 261120
        %v224 = vsel %vm222, %v207, 0
        %226 = vmatprep.subr.mxu0 %v209
        %227 = vmatpush1.msra.mxu0 %v208
        %228 = vmatprep.subr.mxu0 %v211
        %229 = vmatpush1.msra.mxu0 %v210
        %230 = vmatprep.subr.mxu0 %v213
        %231 = vmatpush1.msra.mxu0 %v212
        %232 = vmatprep.subr.mxu0 %v215
        %233 = vmatpush1.msra.mxu0 %v214
        %234 = vmatprep.subr.mxu0 0.0
        %235 = vmatpush1.msra.mxu0 0.0
        %236 = vmatprep.subr.mxu0 0.0
        %237 = vmatpush1.msra.mxu0 0.0
        %238 = vmatprep.subr.mxu0 0.0
        %239 = vmatpush1.msra.mxu0 0.0
        %240 = vmatprep.subr.mxu0 0.0
        %241 = vmatpush1.msra.mxu0 0.0
        %242 = vmatprep.subr.mxu0 0.0
        %243 = vmatpush1.msra.mxu0 0.0
        %244 = vmatprep.subr.mxu0 0.0
        %245 = vmatpush1.msra.mxu0 0.0
        %246 = vmatprep.subr.mxu0 0.0
        %247 = vmatpush1.msra.mxu0 0.0
        %248 = vmatprep.subr.mxu0 0.0
        %249 = vmatpush1.msra.mxu0 0.0
        %250 = vmatprep.subr.mxu0 0.0
        %251 = vmatpush1.msra.mxu0 0.0
        %252 = vmatprep.subr.mxu0 0.0
        %253 = vmatpush1.msra.mxu0 0.0
        %254 = vmatprep.subr.mxu0 0.0
        %255 = vmatpush1.msra.mxu0 0.0
        %256 = vmatprep.subr.mxu0 0.0
        %257 = vmatpush1.msra.mxu0 0.0
        %258 = vmatprep.subr.mxu0 0.0
        %259 = vmatpush1.msra.mxu0 0.0
        %260 = vmatprep.subr.mxu0 0.0
        %261 = vmatpush1.msra.mxu0 0.0
        %262 = vmatprep.subr.mxu0 0.0
        %263 = vmatpush1.msra.mxu0 0.0
        %264 = vmatprep.subr.mxu0 0.0
        %265 = vmatpush1.msra.mxu0 0.0
        %266 = vmatprep.subr.mxu0 0.0
        %267 = vmatpush1.msra.mxu0 0.0
        %268 = vmatprep.subr.mxu0 0.0
        %269 = vmatpush1.msra.mxu0 0.0
        %270 = vmatprep.subr.mxu0 0.0
        %271 = vmatpush1.msra.mxu0 0.0
        %272 = vmatprep.subr.mxu0 0.0
        %273 = vmatpush1.msra.mxu0 0.0
        %274 = vmatprep.subr.mxu0 0.0
        %275 = vmatpush1.msra.mxu0 0.0
        %276 = vmatprep.subr.mxu0 0.0
        %277 = vmatpush1.msra.mxu0 0.0
        %278 = vmatprep.subr.mxu0 0.0
        %279 = vmatpush1.msra.mxu0 0.0
        %280 = vmatprep.subr.mxu0 0.0
        %281 = vmatpush1.msra.mxu0 0.0
        %282 = vmatprep.subr.mxu0 0.0
        %283 = vmatpush1.msra.mxu0 0.0
        %284 = vmatprep.subr.mxu0 0.0
        %285 = vmatpush1.msra.mxu0 0.0
        %286 = vmatprep.subr.mxu0 0.0
        %287 = vmatpush1.msra.mxu0 0.0
        %288 = vmatprep.subr.mxu0 0.0
        %289 = vmatpush1.msra.mxu0 0.0
        %290 = vmatprep.mubr.f32.mxu0 0.0
        %291 = vmatmul.mubr.f32.gmra.mrb[0].mxu0 %v224
        %v292 = vpop.f32.mrb[0].mxu0
        %v293 = vadd.f32 %v220, %v292
        %v294 = vpop.f32.mrb[0].mxu0
        %v295 = vadd.f32 %v220, %v294
        %296 = vdwg.mxu0
        %v297 = vmax.f32 %v293, 0.0
        %v298 = vmax.f32 %v295, 0.0
        %299 = vst [vmem:[%s205] sm:$0xff] %v297
        %300 = vst [vmem:[%s205 + $0x8] sm:$0xff] %v298
        %s301 = smul.u32 2, %s14
        %p302 = scmp.lt.s32.totalorder %s301, 3
        %s303 = scalar_select %p302, %s301, 3
        %s304 = smul.addr %s303, 8
        %s305 = scalar_lea.vmem %s3, %s304
        // Predicated region
        $region56: #{unet_depth_forward.4} parent=50 // pred_check
          %p306 = pneg %p100
        $region57: #{unet_depth_forward.4} parent=50 // pred_check_branch
          %308 = sbr.rel (%p306) target = $region59
        $region58: #{unet_depth_forward.4} parent=50 // pred_region
          %s309 = smul.u32 2, %s14
        $region59: #{unet_depth_forward.4} parent=50 // pred_fallthru
          _
      $region51: #{unet_depth_forward.4} parent=5 // pred_fallthru
        _
      %p310 = scmp.le.s32.totalorder 2, %s9
      // Predicated region
      $region60: #{unet_depth_forward.4} parent=5 // pred_check
        %p311 = pneg %p310
      $region61: #{unet_depth_forward.4} parent=5 // pred_check_branch
        %313 = sbr.rel (%p311) target = $region63
      $region62: #{unet_depth_forward.4} parent=5 // pred_region
        %s314 = ssub.s32 %s9, 2
        // Predicated region
        $region64: #{unet_depth_forward.4} parent=62 // pred_check
          %p315 = pneg %p106
        $region65: #{unet_depth_forward.4} parent=62 // pred_check_branch
          %317 = sbr.rel (%p315) target = $region67
        $region66: #{unet_depth_forward.4} parent=62 // pred_region
          %s318 = smul.u32 2, %s15
          %p319 = scmp.lt.s32.totalorder %s318, 3
          %s320 = scalar_select %p319, %s318, 3
          %s321 = smul.addr %s320, 8
          %s322 = scalar_lea.vmem %s3, %s321
        $region67: #{unet_depth_forward.4} parent=62 // pred_fallthru
          _
      $region63: #{unet_depth_forward.4} parent=5 // pred_fallthru
        _
    $region6: #{unet_depth_forward.4} parent=1 // loop_footer
      %s13 = sadd.s32 1, %s9
    $region7: #{unet_depth_forward.4} parent=1 // loop_footer_branch
      %8 = sbr.rel target = $region3
    $region8: #{unet_depth_forward.4} parent=1 // loop_exit
      _

// kernel: unet_depth_forward.5
$region0: #{unet_depth_forward.5}
  #allocation0 [shape = 'u32[]', space=smem, size = 0x4, offset = 0x4, fixed_abs, tag = 'smem constant byte address 0x4 - core index']
  #allocation1 [shape = 'u32[144,128]{1,0:T(1,128)}', space=vmem, size = 0x12000, scoped, tag = 'internal scratch']
  %s0 = inlined_call_operand.vmem [shape: f32[16,72], index: 0, kind: input, shape index: {}]
  %s1 = inlined_call_operand.vmem [shape: f32[72,128], index: 1, kind: input, shape index: {}]
  %s2 = inlined_call_operand.vmem [shape: f32[16,1], index: 2, kind: input, shape index: {}]
  %s3 = inlined_call_operand.vmem [shape: f32[16,128], index: 3, kind: output, shape index: {}]
  %s4 = sld [smem:[#allocation0]]
  $region22: #{unet_depth_forward.5} parent=0
    _
  %s6 = ssub.s32 1, %s4
  %s7 = scalar_select 0, %s6, %s4
  // Predicated region
  $region2: #{unet_depth_forward.5} parent=0 // pred_check
    _
  $region3: #{unet_depth_forward.5} parent=0 // pred_check_branch
    %9 = sbr.rel (0) target = $region5
  $region4: #{unet_depth_forward.5} parent=0 // pred_region
    _
  $region5: #{unet_depth_forward.5} parent=0 // pred_fallthru
    _
  // Predicated region
  $region6: #{unet_depth_forward.5} parent=0 // pred_check
    _
  $region7: #{unet_depth_forward.5} parent=0 // pred_check_branch
    %11 = sbr.rel (0) target = $region9
  $region8: #{unet_depth_forward.5} parent=0 // pred_region
    _
  $region9: #{unet_depth_forward.5} parent=0 // pred_fallthru
    _
  // Predicated region
  $region10: #{unet_depth_forward.5} parent=0 // pred_check
    _
  $region11: #{unet_depth_forward.5} parent=0 // pred_check_branch
    %13 = sbr.rel (0) target = $region13
  $region12: #{unet_depth_forward.5} parent=0 // pred_region
    _
  $region13: #{unet_depth_forward.5} parent=0 // pred_fallthru
    _
  %v14 = vld [vmem:[%s0] sm:$0xff]
  %v15 = vld [vmem:[%s0 + $0x8] sm:$0xff]
  %v16 = vld [vmem:[%s1] sm:$0xff]
  %v17 = vld [vmem:[%s1 + $0x8] sm:$0xff]
  %v18 = vld [vmem:[%s1 + $0x10] sm:$0xff]
  %v19 = vld [vmem:[%s1 + $0x18] sm:$0xff]
  %v20 = vld [vmem:[%s1 + $0x20] sm:$0xff]
  %v21 = vld [vmem:[%s1 + $0x28] sm:$0xff]
  %v22 = vld [vmem:[%s1 + $0x30] sm:$0xff]
  %v23 = vld [vmem:[%s1 + $0x38] sm:$0xff]
  %v24 = vld [vmem:[%s1 + $0x40] sm:$0xff]
  %v25 = vld [vmem:[%s2] sm:$0xff]
  %v26 = vld [vmem:[%s2 + $0x8] sm:$0xff]
  %28 = vset.pattern.permute.xlu0 0
  %29 = vperm.xlu0 %28, %v25
  %v30 = vpop.permute.xlu0 %29
  %33 = vset.pattern.permute.xlu0 0
  %34 = vperm.xlu0 %33, %v26
  %v35 = vpop.permute.xlu0 %34
  %vm37 = vcmask 588800
  %v39 = vsel %vm37, %v14, 0
  %v42 = vsel %vm37, %v15, 0
  %44 = vmatprep.subr.mxu0 0.0
  %45 = vmatpush1.msra.mxu0 %v16
  %46 = vmatprep.subr.mxu0 0.0
  %47 = vmatpush1.msra.mxu0 %v17
  %48 = vmatprep.subr.mxu0 0.0
  %49 = vmatpush1.msra.mxu0 %v18
  %50 = vmatprep.subr.mxu0 0.0
  %51 = vmatpush1.msra.mxu0 %v19
  %52 = vmatprep.subr.mxu0 0.0
  %53 = vmatpush1.msra.mxu0 %v20
  %54 = vmatprep.subr.mxu0 0.0
  %55 = vmatpush1.msra.mxu0 %v21
  %56 = vmatprep.subr.mxu0 0.0
  %57 = vmatpush1.msra.mxu0 %v22
  %58 = vmatprep.subr.mxu0 0.0
  %59 = vmatpush1.msra.mxu0 %v23
  %60 = vmatprep.subr.mxu0 0.0
  %61 = vmatpush1.msra.mxu0 %v24
  %62 = vmatprep.subr.mxu0 0.0
  %63 = vmatpush1.msra.mxu0 0.0
  %64 = vmatprep.subr.mxu0 0.0
  %65 = vmatpush1.msra.mxu0 0.0
  %66 = vmatprep.subr.mxu0 0.0
  %67 = vmatpush1.msra.mxu0 0.0
  %68 = vmatprep.subr.mxu0 0.0
  %69 = vmatpush1.msra.mxu0 0.0
  %70 = vmatprep.subr.mxu0 0.0
  %71 = vmatpush1.msra.mxu0 0.0
  %72 = vmatprep.subr.mxu0 0.0
  %73 = vmatpush1.msra.mxu0 0.0
  %74 = vmatprep.subr.mxu0 0.0
  %75 = vmatpush1.msra.mxu0 0.0
  %76 = vmatprep.subr.mxu0 0.0
  %77 = vmatpush1.msra.mxu0 0.0
  %78 = vmatprep.subr.mxu0 0.0
  %79 = vmatpush1.msra.mxu0 0.0
  %80 = vmatprep.subr.mxu0 0.0
  %81 = vmatpush1.msra.mxu0 0.0
  %82 = vmatprep.subr.mxu0 0.0
  %83 = vmatpush1.msra.mxu0 0.0
  %84 = vmatprep.subr.mxu0 0.0
  %85 = vmatpush1.msra.mxu0 0.0
  %86 = vmatprep.subr.mxu0 0.0
  %87 = vmatpush1.msra.mxu0 0.0
  %88 = vmatprep.subr.mxu0 0.0
  %89 = vmatpush1.msra.mxu0 0.0
  %90 = vmatprep.subr.mxu0 0.0
  %91 = vmatpush1.msra.mxu0 0.0
  %92 = vmatprep.subr.mxu0 0.0
  %93 = vmatpush1.msra.mxu0 0.0
  %94 = vmatprep.subr.mxu0 0.0
  %95 = vmatpush1.msra.mxu0 0.0
  %96 = vmatprep.subr.mxu0 0.0
  %97 = vmatpush1.msra.mxu0 0.0
  %98 = vmatprep.subr.mxu0 0.0
  %99 = vmatpush1.msra.mxu0 0.0
  %100 = vmatprep.subr.mxu0 0.0
  %101 = vmatpush1.msra.mxu0 0.0
  %102 = vmatprep.subr.mxu0 0.0
  %103 = vmatpush1.msra.mxu0 0.0
  %104 = vmatprep.subr.mxu0 0.0
  %105 = vmatpush1.msra.mxu0 0.0
  %106 = vmatprep.subr.mxu0 0.0
  %107 = vmatpush1.msra.mxu0 0.0
  %108 = vmatprep.mubr.f32.mxu0 0.0
  %109 = vmatmul.mubr.f32.gmra.mrb[0].mxu0 %v39
  %v110 = vpop.f32.mrb[0].mxu0
  %v111 = vadd.f32 %v30, %v110
  %v112 = vpop.f32.mrb[0].mxu0
  %113 = vmatprep.mubr.f32.mxu0 0.0
  %114 = vmatmul.mubr.f32.gmra.mrb[0].mxu0 %v42
  %v115 = vpop.f32.mrb[0].mxu0
  %v116 = vadd.f32 %v35, %v115
  %v117 = vpop.f32.mrb[0].mxu0
  %118 = vdwg.mxu0
  %v119 = vmax.f32 %v111, 0.0
  %v120 = vmax.f32 %v116, 0.0
  %121 = vst [vmem:[%s3] sm:$0xff] %v119
  %122 = vst [vmem:[%s3 + $0x8] sm:$0xff] %v120
  // Predicated region
  $region14: #{unet_depth_forward.5} parent=0 // pred_check
    _
  $region15: #{unet_depth_forward.5} parent=0 // pred_check_branch
    %124 = sbr.rel (0) target = $region17
  $region16: #{unet_depth_forward.5} parent=0 // pred_region
    _
  $region17: #{unet_depth_forward.5} parent=0 // pred_fallthru
    _
  // Predicated region
  $region18: #{unet_depth_forward.5} parent=0 // pred_check
    _
  $region19: #{unet_depth_forward.5} parent=0 // pred_check_branch
    %126 = sbr.rel (0) target = $region21
  $region20: #{unet_depth_forward.5} parent=0 // pred_region
    _
  $region21: #{unet_depth_forward.5} parent=0 // pred_fallthru
    _

// kernel: unet_depth_forward.6
$region0: #{unet_depth_forward.6}
  #allocation0 [shape = 'u32[]', space=smem, size = 0x4, offset = 0x4, fixed_abs, tag = 'smem constant byte address 0x4 - core index']
  #allocation1 [shape = 'u32[144,128]{1,0:T(1,128)}', space=vmem, size = 0x12000, scoped, tag = 'internal scratch']
  %s0 = inlined_call_operand.vmem [shape: f32[8,144], index: 0, kind: input, shape index: {}]
  %s1 = inlined_call_operand.vmem [shape: f32[8,72], index: 1, kind: input, shape index: {}]
  %s2 = inlined_call_operand.vmem [shape: f32[144,512], index: 2, kind: input, shape index: {}]
  %s3 = inlined_call_operand.vmem [shape: f32[72,512], index: 3, kind: input, shape index: {}]
  %s4 = inlined_call_operand.vmem [shape: f32[8,1], index: 4, kind: input, shape index: {}]
  %s5 = inlined_call_operand.vmem [shape: f32[8,512], index: 5, kind: output, shape index: {}]
  %s6 = sld [smem:[#allocation0]]
  $region99: #{unet_depth_forward.6} parent=0
    _
  %s8 = ssub.s32 1, %s6
  %s9 = scalar_select 0, %s8, %s6
  $region1: #{unet_depth_forward.6} parent=0
    #allocation2 [shape = 'u8[294912]{0}', space=vmem, size = 0x48000, scoped, tag = 'input window, operand 2']
    #allocation3 [shape = 'u8[147456]{0}', space=vmem, size = 0x24000, scoped, tag = 'input window, operand 3']
    loop: start=0, step=1, limit=4
    $region2: #{unet_depth_forward.6} parent=1 // loop_pre_header
      _
    $region3: #{unet_depth_forward.6} parent=1 // loop_header
      %s11 = sphi 0, %s15
      %p12 = scmp.ge.s32.totalorder %s11, 4
      %s19 = sphi 0, %s19
      %s21 = sphi 0, %s19
      %s22 = sphi 0, %s21
      %s36 = sphi 0, %s22
      %s40 = sphi 0, %s40
      %s42 = sphi 0, %s40
      %s43 = sphi 0, %s42
      %s57 = sphi 0, %s43
      %s63 = sphi 0, %s65
      %s66 = sphi 0, %s63
      %s67 = sphi 0, %s66
      %s83 = sphi 0, %s67
      %s89 = sphi 0, %s91
      %s92 = sphi 0, %s89
      %s93 = sphi 0, %s92
      %s109 = sphi 0, %s93
      %s113 = sphi 0, %s113
      %s115 = sphi 0, %s113
      %s116 = sphi 0, %s115
      %s130 = sphi 0, %s116
      %s136 = sphi 0, %s138
      %s139 = sphi 0, %s136
      %s140 = sphi 0, %s139
      %s156 = sphi 0, %s140
    $region4: #{unet_depth_forward.6} parent=1 // loop_header_branch
      %14 = sbr.rel (%p12) target = $region8
    $region5: #{unet_depth_forward.6} parent=1 // loop_body
      %s16 = ssub.s32 %s11, 1
      %s17 = ssub.s32 %s11, 2
      %s18 = sadd.s32 %s11, 1
      %s20 = sadd.s32 %s19, 1
      %p23 = scmp.eq.s32.totalorder %s11, 1
      %p24 = scmp.ne.s32.totalorder %s19, %s21
      %p25 = scmp.eq.s32.totalorder %s11, 0
      %p26 = por %p24, %p25
      %p27 = scmp.ne.s32.totalorder %s19, %s21
      %p28 = scmp.eq.s32.totalorder %s16, 1
      %p29 = por %p27, %p28
      %p30 = scmp.ne.s32.totalorder %s21, %s22
      %p31 = scmp.eq.s32.totalorder %s16, 0
      %p32 = por %p30, %p31
      %p33 = scmp.ne.s32.totalorder %s21, %s22
      %p34 = scmp.eq.s32.totalorder %s17, 1
      %p35 = por %p33, %p34
      %p37 = scmp.ne.s32.totalorder %s22, %s36
      %p38 = scmp.eq.s32.totalorder %s17, 0
      %p39 = por %p37, %p38
      %s41 = sadd.s32 %s40, 1
      %p44 = scmp.eq.s32.totalorder %s11, 1
      %p45 = scmp.ne.s32.totalorder %s40, %s42
      %p46 = scmp.eq.s32.totalorder %s11, 0
      %p47 = por %p45, %p46
      %p48 = scmp.ne.s32.totalorder %s40, %s42
      %p49 = scmp.eq.s32.totalorder %s16, 1
      %p50 = por %p48, %p49
      %p51 = scmp.ne.s32.totalorder %s42, %s43
      %p52 = scmp.eq.s32.totalorder %s16, 0
      %p53 = por %p51, %p52
      %p54 = scmp.ne.s32.totalorder %s42, %s43
      %p55 = scmp.eq.s32.totalorder %s17, 1
      %p56 = por %p54, %p55
      %p58 = scmp.ne.s32.totalorder %s43, %s57
      %p59 = scmp.eq.s32.totalorder %s17, 0
      %p60 = por %p58, %p59
      %s61 = ssub.s32 %s11, %s18
      %p62 = scmp.eq.s32.totalorder %s61, 0
      %s64 = sadd.s32 %s63, 1
      %s65 = scalar_select %p62, %s63, %s64
      %p68 = pneg %p62
      %p69 = scmp.eq.s32.totalorder %s11, 1
      %p70 = por %p68, %p69
      %p71 = scmp.ne.s32.totalorder %s63, %s66
      %p72 = scmp.eq.s32.totalorder %s11, 0
      %p73 = por %p71, %p72
      %p74 = scmp.ne.s32.totalorder %s63, %s66
      %p75 = scmp.eq.s32.totalorder %s16, 1
      %p76 = por %p74, %p75
      %p77 = scmp.ne.s32.totalorder %s66, %s67
      %p78 = scmp.eq.s32.totalorder %s16, 0
      %p79 = por %p77, %p78
      %p80 = scmp.ne.s32.totalorder %s66, %s67
      %p81 = scmp.eq.s32.totalorder %s17, 1
      %p82 = por %p80, %p81
      %p84 = scmp.ne.s32.totalorder %s67, %s83
      %p85 = scmp.eq.s32.totalorder %s17, 0
      %p86 = por %p84, %p85
      %s87 = ssub.s32 %s11, %s18
      %p88 = scmp.eq.s32.totalorder %s87, 0
      %s90 = sadd.s32 %s89, 1
      %s91 = scalar_select %p88, %s89, %s90
      %p94 = pneg %p88
      %p95 = scmp.eq.s32.totalorder %s11, 1
      %p96 = por %p94, %p95
      %p97 = scmp.ne.s32.totalorder %s89, %s92
      %p98 = scmp.eq.s32.totalorder %s11, 0
      %p99 = por %p97, %p98
      %p100 = scmp.ne.s32.totalorder %s89, %s92
      %p101 = scmp.eq.s32.totalorder %s16, 1
      %p102 = por %p100, %p101
      %p103 = scmp.ne.s32.totalorder %s92, %s93
      %p104 = scmp.eq.s32.totalorder %s16, 0
      %p105 = por %p103, %p104
      %p106 = scmp.ne.s32.totalorder %s92, %s93
      %p107 = scmp.eq.s32.totalorder %s17, 1
      %p108 = por %p106, %p107
      %p110 = scmp.ne.s32.totalorder %s93, %s109
      %p111 = scmp.eq.s32.totalorder %s17, 0
      %p112 = por %p110, %p111
      %s114 = sadd.s32 %s113, 1
      %p117 = scmp.eq.s32.totalorder %s11, 1
      %p118 = scmp.ne.s32.totalorder %s113, %s115
      %p119 = scmp.eq.s32.totalorder %s11, 0
      %p120 = por %p118, %p119
      %p121 = scmp.ne.s32.totalorder %s113, %s115
      %p122 = scmp.eq.s32.totalorder %s16, 1
      %p123 = por %p121, %p122
      %p124 = scmp.ne.s32.totalorder %s115, %s116
      %p125 = scmp.eq.s32.totalorder %s16, 0
      %p126 = por %p124, %p125
      %p127 = scmp.ne.s32.totalorder %s115, %s116
      %p128 = scmp.eq.s32.totalorder %s17, 1
      %p129 = por %p127, %p128
      %p131 = scmp.ne.s32.totalorder %s116, %s130
      %p132 = scmp.eq.s32.totalorder %s17, 0
      %p133 = por %p131, %p132
      %s134 = ssub.s32 %s11, %s18
      %p135 = scmp.eq.s32.totalorder %s134, 0
      %s137 = sadd.s32 %s136, 1
      %s138 = scalar_select %p135, %s136, %s137
      %p141 = pneg %p135
      %p142 = scmp.eq.s32.totalorder %s11, 1
      %p143 = por %p141, %p142
      %p144 = scmp.ne.s32.totalorder %s136, %s139
      %p145 = scmp.eq.s32.totalorder %s11, 0
      %p146 = por %p144, %p145
      %p147 = scmp.ne.s32.totalorder %s136, %s139
      %p148 = scmp.eq.s32.totalorder %s16, 1
      %p149 = por %p147, %p148
      %p150 = scmp.ne.s32.totalorder %s139, %s140
      %p151 = scmp.eq.s32.totalorder %s16, 0
      %p152 = por %p150, %p151
      %p153 = scmp.ne.s32.totalorder %s139, %s140
      %p154 = scmp.eq.s32.totalorder %s17, 1
      %p155 = por %p153, %p154
      %p157 = scmp.ne.s32.totalorder %s140, %s156
      %p158 = scmp.eq.s32.totalorder %s17, 0
      %p159 = por %p157, %p158
      %p160 = scmp.le.s32.totalorder 1, %s11
      %p161 = scmp.lt.s32.totalorder %s11, 3
      %p162 = pnand %p160, %p161
      %p163 = pneg %p162
      // Predicated region
      $region9: #{unet_depth_forward.6} parent=5 // pred_check
        _
      $region10: #{unet_depth_forward.6} parent=5 // pred_check_branch
        %165 = sbr.rel (%p162) target = $region12
      $region11: #{unet_depth_forward.6} parent=5 // pred_region
        %s166 = ssub.s32 %s11, 1
        // Predicated region
        $region13: #{unet_depth_forward.6} parent=11 // pred_check
          %p167 = pneg %p32
        $region14: #{unet_depth_forward.6} parent=11 // pred_check_branch
          %169 = sbr.rel (%p167) target = $region16
        $region15: #{unet_depth_forward.6} parent=11 // pred_region
          _
        $region16: #{unet_depth_forward.6} parent=11 // pred_fallthru
          _
        // Predicated region
        $region17: #{unet_depth_forward.6} parent=11 // pred_check
          %p170 = pneg %p53
        $region18: #{unet_depth_forward.6} parent=11 // pred_check_branch
          %172 = sbr.rel (%p170) target = $region20
        $region19: #{unet_depth_forward.6} parent=11 // pred_region
          _
        $region20: #{unet_depth_forward.6} parent=11 // pred_fallthru
          _
        // Predicated region
        $region21: #{unet_depth_forward.6} parent=11 // pred_check
          %p173 = pneg %p126
        $region22: #{unet_depth_forward.6} parent=11 // pred_check_branch
          %175 = sbr.rel (%p173) target = $region24
        $region23: #{unet_depth_forward.6} parent=11 // pred_region
          _
        $region24: #{unet_depth_forward.6} parent=11 // pred_fallthru
          _
      $region12: #{unet_depth_forward.6} parent=5 // pred_fallthru
        _
      %p176 = scmp.lt.s32.totalorder %s11, 2
      // Predicated region
      $region25: #{unet_depth_forward.6} parent=5 // pred_check
        %p177 = pneg %p176
      $region26: #{unet_depth_forward.6} parent=5 // pred_check_branch
        %179 = sbr.rel (%p177) target = $region28
      $region27: #{unet_depth_forward.6} parent=5 // pred_region
        // Predicated region
        $region29: #{unet_depth_forward.6} parent=27 // pred_check
          %p180 = pneg %p73
        $region30: #{unet_depth_forward.6} parent=27 // pred_check_branch
          %182 = sbr.rel (%p180) target = $region32
        $region31: #{unet_depth_forward.6} parent=27 // pred_region
          %s183 = sand.u32 %s63, 1
          %s184 = sand.u32 %s63, 1
          %s185 = smul.addr %s184, 288
          %s186 = scalar_lea.vmem [#allocation2], %s185
          %s187 = smul.u32 2, %s11
          %s188 = smul.addr %s187, 8
          %s189 = scalar_lea.vmem %s2, %s188
          // Predicated region
          $region33: #{unet_depth_forward.6} parent=31 // pred_check
            _
          $region34: #{unet_depth_forward.6} parent=31 // pred_check_branch
            %191 = sbr.rel (0) target = $region36
          $region35: #{unet_depth_forward.6} parent=31 // pred_region
            // Predicated region
            $region37: #{unet_depth_forward.6} parent=35 // pred_check
              _
            $region38: #{unet_depth_forward.6} parent=35 // pred_check_branch
              %193 = sbr.rel (0) target = $region40
            $region39: #{unet_depth_forward.6} parent=35 // pred_region
              loop: start=0, step=1, limit=1
              $region41: #{unet_depth_forward.6} parent=39 // loop_pre_header
                _
              $region42: #{unet_depth_forward.6} parent=39 // loop_header
                %s195 = sphi 0, %s199
                %p196 = scmp.ge.s32.totalorder %s195, 1
                %s200 = sphi %s189, %s189
                %s201 = sphi %s186, %s186
              $region43: #{unet_depth_forward.6} parent=39 // loop_header_branch
                %198 = sbr.rel (%p196) target = $region47
              $region44: #{unet_depth_forward.6} parent=39 // loop_body
                %v202 = vld [vmem:[%s200] sm:$0xff]
                %203 = vst [vmem:[%s201] sm:$0xff] %v202
                %v204 = vld [vmem:[%s200 + $0x8] sm:$0xff]
                %205 = vst [vmem:[%s201 + $0x8] sm:$0xff] %v204
                %v206 = vld [vmem:[%s200 + $0x20] sm:$0xff]
                %207 = vst [vmem:[%s201 + $0x10] sm:$0xff] %v206
                %v208 = vld [vmem:[%s200 + $0x28] sm:$0xff]
                %209 = vst [vmem:[%s201 + $0x18] sm:$0xff] %v208
                %v210 = vld [vmem:[%s200 + $0x40] sm:$0xff]
                %211 = vst [vmem:[%s201 + $0x20] sm:$0xff] %v210
                %v212 = vld [vmem:[%s200 + $0x48] sm:$0xff]
                %213 = vst [vmem:[%s201 + $0x28] sm:$0xff] %v212
                %v214 = vld [vmem:[%s200 + $0x60] sm:$0xff]
                %215 = vst [vmem:[%s201 + $0x30] sm:$0xff] %v214
                %v216 = vld [vmem:[%s200 + $0x68] sm:$0xff]
                %217 = vst [vmem:[%s201 + $0x38] sm:$0xff] %v216
                %v218 = vld [vmem:[%s200 + $0x80] sm:$0xff]
                %219 = vst [vmem:[%s201 + $0x40] sm:$0xff] %v218
                %v220 = vld [vmem:[%s200 + $0x88] sm:$0xff]
                %221 = vst [vmem:[%s201 + $0x48] sm:$0xff] %v220
                %v222 = vld [vmem:[%s200 + $0xa0] sm:$0xff]
                %223 = vst [vmem:[%s201 + $0x50] sm:$0xff] %v222
                %v224 = vld [vmem:[%s200 + $0xa8] sm:$0xff]
                %225 = vst [vmem:[%s201 + $0x58] sm:$0xff] %v224
                %v226 = vld [vmem:[%s200 + $0xc0] sm:$0xff]
                %227 = vst [vmem:[%s201 + $0x60] sm:$0xff] %v226
                %v228 = vld [vmem:[%s200 + $0xc8] sm:$0xff]
                %229 = vst [vmem:[%s201 + $0x68] sm:$0xff] %v228
                %v230 = vld [vmem:[%s200 + $0xe0] sm:$0xff]
                %231 = vst [vmem:[%s201 + $0x70] sm:$0xff] %v230
                %v232 = vld [vmem:[%s200 + $0xe8] sm:$0xff]
                %233 = vst [vmem:[%s201 + $0x78] sm:$0xff] %v232
                %v234 = vld [vmem:[%s200 + $0x100] sm:$0xff]
                %235 = vst [vmem:[%s201 + $0x80] sm:$0xff] %v234
                %v236 = vld [vmem:[%s200 + $0x108] sm:$0xff]
                %237 = vst [vmem:[%s201 + $0x88] sm:$0xff] %v236
                %v238 = vld [vmem:[%s200 + $0x120] sm:$0xff]
                %239 = vst [vmem:[%s201 + $0x90] sm:$0xff] %v238
                %v240 = vld [vmem:[%s200 + $0x128] sm:$0xff]
                %241 = vst [vmem:[%s201 + $0x98] sm:$0xff] %v240
                %v242 = vld [vmem:[%s200 + $0x140] sm:$0xff]
                %243 = vst [vmem:[%s201 + $0xa0] sm:$0xff] %v242
                %v244 = vld [vmem:[%s200 + $0x148] sm:$0xff]
                %245 = vst [vmem:[%s201 + $0xa8] sm:$0xff] %v244
                %v246 = vld [vmem:[%s200 + $0x160] sm:$0xff]
                %247 = vst [vmem:[%s201 + $0xb0] sm:$0xff] %v246
                %v248 = vld [vmem:[%s200 + $0x168] sm:$0xff]
                %249 = vst [vmem:[%s201 + $0xb8] sm:$0xff] %v248
                %v250 = vld [vmem:[%s200 + $0x180] sm:$0xff]
                %251 = vst [vmem:[%s201 + $0xc0] sm:$0xff] %v250
                %v252 = vld [vmem:[%s200 + $0x188] sm:$0xff]
                %253 = vst [vmem:[%s201 + $0xc8] sm:$0xff] %v252
                %v254 = vld [vmem:[%s200 + $0x1a0] sm:$0xff]
                %255 = vst [vmem:[%s201 + $0xd0] sm:$0xff] %v254
                %v256 = vld [vmem:[%s200 + $0x1a8] sm:$0xff]
                %257 = vst [vmem:[%s201 + $0xd8] sm:$0xff] %v256
                %v258 = vld [vmem:[%s200 + $0x1c0] sm:$0xff]
                %259 = vst [vmem:[%s201 + $0xe0] sm:$0xff] %v258
                %v260 = vld [vmem:[%s200 + $0x1c8] sm:$0xff]
                %261 = vst [vmem:[%s201 + $0xe8] sm:$0xff] %v260
                %v262 = vld [vmem:[%s200 + $0x1e0] sm:$0xff]
                %263 = vst [vmem:[%s201 + $0xf0] sm:$0xff] %v262
                %v264 = vld [vmem:[%s200 + $0x1e8] sm:$0xff]
                %265 = vst [vmem:[%s201 + $0xf8] sm:$0xff] %v264
                %v266 = vld [vmem:[%s200 + $0x200] sm:$0xff]
                %267 = vst [vmem:[%s201 + $0x100] sm:$0xff] %v266
                %v268 = vld [vmem:[%s200 + $0x208] sm:$0xff]
                %269 = vst [vmem:[%s201 + $0x108] sm:$0xff] %v268
                %v270 = vld [vmem:[%s200 + $0x220] sm:$0xff]
                %271 = vst [vmem:[%s201 + $0x110] sm:$0xff] %v270
                %v272 = vld [vmem:[%s200 + $0x228] sm:$0xff]
                %273 = vst [vmem:[%s201 + $0x118] sm:$0xff] %v272
              $region45: #{unet_depth_forward.6} parent=39 // loop_footer
                %s199 = sadd.s32 1, %s195
              $region46: #{unet_depth_forward.6} parent=39 // loop_footer_branch
                %194 = sbr.rel target = $region42
              $region47: #{unet_depth_forward.6} parent=39 // loop_exit
                _
            $region40: #{unet_depth_forward.6} parent=35 // pred_fallthru
              _
            // Predicated region
            $region48: #{unet_depth_forward.6} parent=35 // pred_check
              _
            $region49: #{unet_depth_forward.6} parent=35 // pred_check_branch
              %275 = sbr.rel target = $region51
            $region50: #{unet_depth_forward.6} parent=35 // pred_region
              _
            $region51: #{unet_depth_forward.6} parent=35 // pred_fallthru
              _
          $region36: #{unet_depth_forward.6} parent=31 // pred_fallthru
            _
          %276 = vnop
        $region32: #{unet_depth_forward.6} parent=27 // pred_fallthru
          _
        // Predicated region
        $region52: #{unet_depth_forward.6} parent=27 // pred_check
          %p277 = pneg %p99
        $region53: #{unet_depth_forward.6} parent=27 // pred_check_branch
          %279 = sbr.rel (%p277) target = $region55
        $region54: #{unet_depth_forward.6} parent=27 // pred_region
          %s280 = sand.u32 %s89, 1
          %s281 = sand.u32 %s89, 1
          %s282 = smul.addr %s281, 144
          %s283 = scalar_lea.vmem [#allocation3], %s282
          %s284 = smul.u32 2, %s11
          %s285 = smul.addr %s284, 8
          %s286 = scalar_lea.vmem %s3, %s285
          // Predicated region
          $region56: #{unet_depth_forward.6} parent=54 // pred_check
            _
          $region57: #{unet_depth_forward.6} parent=54 // pred_check_branch
            %288 = sbr.rel (0) target = $region59
          $region58: #{unet_depth_forward.6} parent=54 // pred_region
            // Predicated region
            $region60: #{unet_depth_forward.6} parent=58 // pred_check
              _
            $region61: #{unet_depth_forward.6} parent=58 // pred_check_branch
              %290 = sbr.rel (0) target = $region63
            $region62: #{unet_depth_forward.6} parent=58 // pred_region
              loop: start=0, step=1, limit=1
              $region64: #{unet_depth_forward.6} parent=62 // loop_pre_header
                _
              $region65: #{unet_depth_forward.6} parent=62 // loop_header
                %s292 = sphi 0, %s296
                %p293 = scmp.ge.s32.totalorder %s292, 1
                %s297 = sphi %s286, %s286
                %s298 = sphi %s283, %s283
              $region66: #{unet_depth_forward.6} parent=62 // loop_header_branch
                %295 = sbr.rel (%p293) target = $region70
              $region67: #{unet_depth_forward.6} parent=62 // loop_body
                %v299 = vld [vmem:[%s297] sm:$0xff]
                %300 = vst [vmem:[%s298] sm:$0xff] %v299
                %v301 = vld [vmem:[%s297 + $0x8] sm:$0xff]
                %302 = vst [vmem:[%s298 + $0x8] sm:$0xff] %v301
                %v303 = vld [vmem:[%s297 + $0x20] sm:$0xff]
                %304 = vst [vmem:[%s298 + $0x10] sm:$0xff] %v303
                %v305 = vld [vmem:[%s297 + $0x28] sm:$0xff]
                %306 = vst [vmem:[%s298 + $0x18] sm:$0xff] %v305
                %v307 = vld [vmem:[%s297 + $0x40] sm:$0xff]
                %308 = vst [vmem:[%s298 + $0x20] sm:$0xff] %v307
                %v309 = vld [vmem:[%s297 + $0x48] sm:$0xff]
                %310 = vst [vmem:[%s298 + $0x28] sm:$0xff] %v309
                %v311 = vld [vmem:[%s297 + $0x60] sm:$0xff]
                %312 = vst [vmem:[%s298 + $0x30] sm:$0xff] %v311
                %v313 = vld [vmem:[%s297 + $0x68] sm:$0xff]
                %314 = vst [vmem:[%s298 + $0x38] sm:$0xff] %v313
                %v315 = vld [vmem:[%s297 + $0x80] sm:$0xff]
                %316 = vst [vmem:[%s298 + $0x40] sm:$0xff] %v315
                %v317 = vld [vmem:[%s297 + $0x88] sm:$0xff]
                %318 = vst [vmem:[%s298 + $0x48] sm:$0xff] %v317
                %v319 = vld [vmem:[%s297 + $0xa0] sm:$0xff]
                %320 = vst [vmem:[%s298 + $0x50] sm:$0xff] %v319
                %v321 = vld [vmem:[%s297 + $0xa8] sm:$0xff]
                %322 = vst [vmem:[%s298 + $0x58] sm:$0xff] %v321
                %v323 = vld [vmem:[%s297 + $0xc0] sm:$0xff]
                %324 = vst [vmem:[%s298 + $0x60] sm:$0xff] %v323
                %v325 = vld [vmem:[%s297 + $0xc8] sm:$0xff]
                %326 = vst [vmem:[%s298 + $0x68] sm:$0xff] %v325
                %v327 = vld [vmem:[%s297 + $0xe0] sm:$0xff]
                %328 = vst [vmem:[%s298 + $0x70] sm:$0xff] %v327
                %v329 = vld [vmem:[%s297 + $0xe8] sm:$0xff]
                %330 = vst [vmem:[%s298 + $0x78] sm:$0xff] %v329
                %v331 = vld [vmem:[%s297 + $0x100] sm:$0xff]
                %332 = vst [vmem:[%s298 + $0x80] sm:$0xff] %v331
                %v333 = vld [vmem:[%s297 + $0x108] sm:$0xff]
                %334 = vst [vmem:[%s298 + $0x88] sm:$0xff] %v333
              $region68: #{unet_depth_forward.6} parent=62 // loop_footer
                %s296 = sadd.s32 1, %s292
              $region69: #{unet_depth_forward.6} parent=62 // loop_footer_branch
                %291 = sbr.rel target = $region65
              $region70: #{unet_depth_forward.6} parent=62 // loop_exit
                _
            $region63: #{unet_depth_forward.6} parent=58 // pred_fallthru
              _
            // Predicated region
            $region71: #{unet_depth_forward.6} parent=58 // pred_check
              _
            $region72: #{unet_depth_forward.6} parent=58 // pred_check_branch
              %336 = sbr.rel target = $region74
            $region73: #{unet_depth_forward.6} parent=58 // pred_region
              _
            $region74: #{unet_depth_forward.6} parent=58 // pred_fallthru
              _
          $region59: #{unet_depth_forward.6} parent=54 // pred_fallthru
            _
          %337 = vnop
        $region55: #{unet_depth_forward.6} parent=27 // pred_fallthru
          _
      $region28: #{unet_depth_forward.6} parent=5 // pred_fallthru
        _
      %p338 = scmp.le.s32.totalorder 1, %s11
      %p339 = scmp.lt.s32.totalorder %s11, 3
      %p340 = pnand %p338, %p339
      %p341 = pneg %p340
      // Predicated region
      $region75: #{unet_depth_forward.6} parent=5 // pred_check
        _
      $region76: #{unet_depth_forward.6} parent=5 // pred_check_branch
        %343 = sbr.rel (%p340) target = $region78
      $region77: #{unet_depth_forward.6} parent=5 // pred_region
        %s344 = ssub.s32 %s11, 1
        %s345 = sand.u32 %s66, 1
        %s346 = sand.u32 %s66, 1
        %s347 = smul.addr %s346, 288
        %s348 = scalar_lea.vmem [#allocation2], %s347
        // Predicated region
        $region79: #{unet_depth_forward.6} parent=77 // pred_check
          %p349 = pneg %p79
        $region80: #{unet_depth_forward.6} parent=77 // pred_check_branch
          %351 = sbr.rel (%p349) target = $region82
        $region81: #{unet_depth_forward.6} parent=77 // pred_region
          _
        $region82: #{unet_depth_forward.6} parent=77 // pred_fallthru
          _
        %s352 = sand.u32 %s92, 1
        %s353 = sand.u32 %s92, 1
        %s354 = smul.addr %s353, 144
        %s355 = scalar_lea.vmem [#allocation3], %s354
        // Predicated region
        $region83: #{unet_depth_forward.6} parent=77 // pred_check
          %p356 = pneg %p105
        $region84: #{unet_depth_forward.6} parent=77 // pred_check_branch
          %358 = sbr.rel (%p356) target = $region86
        $region85: #{unet_depth_forward.6} parent=77 // pred_region
          _
        $region86: #{unet_depth_forward.6} parent=77 // pred_fallthru
          _
        %p359 = pneg %p32
        %p360 = pneg %p29
        %p361 = pneg %p53
        %p362 = pneg %p50
        %s363 = sand.u32 %s66, 1
        %s364 = sand.u32 %s66, 1
        %s365 = smul.addr %s364, 288
        %s366 = scalar_lea.vmem [#allocation2], %s365
        %p367 = pneg %p79
        %p368 = pneg %p76
        %s369 = sand.u32 %s92, 1
        %s370 = sand.u32 %s92, 1
        %s371 = smul.addr %s370, 144
        %s372 = scalar_lea.vmem [#allocation3], %s371
        %p373 = pneg %p105
        %p374 = pneg %p102
        %p375 = pneg %p126
        %p376 = pneg %p123
        %p377 = pneg %p152
        %p378 = pneg %p149
        %s379 = smul.u32 2, %s16
        %p380 = scmp.lt.s32.totalorder %s379, 3
        %s381 = scalar_select %p380, %s379, 3
        %s382 = smul.addr %s381, 8
        %s383 = scalar_lea.vmem %s5, %s382
        %s384 = smul.u32 2, %s16
        %s385 = smul.u32 2, %s16
        %s386 = smul.u32 2, %s16
        %p387 = scmp.lt.s32.totalorder %s386, 3
        %s388 = scalar_select %p387, %s386, 3
        %s389 = smul.addr %s388, 8
        %s390 = scalar_lea.vmem %s5, %s389
        %s391 = smul.u32 2, %s16
        %v392 = vld [vmem:[%s0] sm:$0xff]
        %v393 = vld [vmem:[%s0 + $0x8] sm:$0xff]
        %v394 = vld [vmem:[%s348] sm:$0xff]
        %v395 = vld [vmem:[%s348 + $0x8] sm:$0xff]
        %v396 = vld [vmem:[%s348 + $0x10] sm:$0xff]
        %v397 = vld [vmem:[%s348 + $0x18] sm:$0xff]
        %v398 = vld [vmem:[%s348 + $0x20] sm:$0xff]
        %v399 = vld [vmem:[%s348 + $0x28] sm:$0xff]
        %v400 = vld [vmem:[%s348 + $0x30] sm:$0xff]
        %v401 = vld [vmem:[%s348 + $0x38] sm:$0xff]
        %v402 = vld [vmem:[%s348 + $0x40] sm:$0xff]
        %v403 = vld [vmem:[%s348 + $0x48] sm:$0xff]
        %v404 = vld [vmem:[%s348 + $0x50] sm:$0xff]
        %v405 = vld [vmem:[%s348 + $0x58] sm:$0xff]
        %v406 = vld [vmem:[%s348 + $0x60] sm:$0xff]
        %v407 = vld [vmem:[%s348 + $0x68] sm:$0xff]
        %v408 = vld [vmem:[%s348 + $0x70] sm:$0xff]
        %v409 = vld [vmem:[%s348 + $0x78] sm:$0xff]
        %v410 = vld [vmem:[%s348 + $0x80] sm:$0xff]
        %v411 = vld [vmem:[%s348 + $0x88] sm:$0xff]
        %v412 = vld [vmem:[%s348 + $0x90] sm:$0xff]
        %v413 = vld [vmem:[%s348 + $0x98] sm:$0xff]
        %v414 = vld [vmem:[%s348 + $0xa0] sm:$0xff]
        %v415 = vld [vmem:[%s348 + $0xa8] sm:$0xff]
        %v416 = vld [vmem:[%s348 + $0xb0] sm:$0xff]
        %v417 = vld [vmem:[%s348 + $0xb8] sm:$0xff]
        %v418 = vld [vmem:[%s348 + $0xc0] sm:$0xff]
        %v419 = vld [vmem:[%s348 + $0xc8] sm:$0xff]
        %v420 = vld [vmem:[%s348 + $0xd0] sm:$0xff]
        %v421 = vld [vmem:[%s348 + $0xd8] sm:$0xff]
        %v422 = vld [vmem:[%s348 + $0xe0] sm:$0xff]
        %v423 = vld [vmem:[%s348 + $0xe8] sm:$0xff]
        %v424 = vld [vmem:[%s348 + $0xf0] sm:$0xff]
        %v425 = vld [vmem:[%s348 + $0xf8] sm:$0xff]
        %v426 = vld [vmem:[%s348 + $0x100] sm:$0xff]
        %v427 = vld [vmem:[%s348 + $0x108] sm:$0xff]
        %v428 = vld [vmem:[%s348 + $0x110] sm:$0xff]
        %v429 = vld [vmem:[%s348 + $0x118] sm:$0xff]
        %v430 = vld [vmem:[%s1] sm:$0xff]
        %v431 = vld [vmem:[%s355] sm:$0xff]
        %v432 = vld [vmem:[%s355 + $0x8] sm:$0xff]
        %v433 = vld [vmem:[%s355 + $0x10] sm:$0xff]
        %v434 = vld [vmem:[%s355 + $0x18] sm:$0xff]
        %v435 = vld [vmem:[%s355 + $0x20] sm:$0xff]
        %v436 = vld [vmem:[%s355 + $0x28] sm:$0xff]
        %v437 = vld [vmem:[%s355 + $0x30] sm:$0xff]
        %v438 = vld [vmem:[%s355 + $0x38] sm:$0xff]
        %v439 = vld [vmem:[%s355 + $0x40] sm:$0xff]
        %v440 = vld [vmem:[%s355 + $0x48] sm:$0xff]
        %v441 = vld [vmem:[%s355 + $0x50] sm:$0xff]
        %v442 = vld [vmem:[%s355 + $0x58] sm:$0xff]
        %v443 = vld [vmem:[%s355 + $0x60] sm:$0xff]
        %v444 = vld [vmem:[%s355 + $0x68] sm:$0xff]
        %v445 = vld [vmem:[%s355 + $0x70] sm:$0xff]
        %v446 = vld [vmem:[%s355 + $0x78] sm:$0xff]
        %v447 = vld [vmem:[%s355 + $0x80] sm:$0xff]
        %v448 = vld [vmem:[%s355 + $0x88] sm:$0xff]
        %vm449 = vcmask 588800
        %v451 = vsel %vm449, %v430, 0
        %453 = vmatprep.subr.mxu0 %v432
        %454 = vmatpush1.msra.mxu0 %v431
        %455 = vmatprep.subr.mxu0 %v434
        %456 = vmatpush1.msra.mxu0 %v433
        %457 = vmatprep.subr.mxu0 %v436
        %458 = vmatpush1.msra.mxu0 %v435
        %459 = vmatprep.subr.mxu0 %v438
        %460 = vmatpush1.msra.mxu0 %v437
        %461 = vmatprep.subr.mxu0 %v440
        %462 = vmatpush1.msra.mxu0 %v439
        %463 = vmatprep.subr.mxu0 %v442
        %464 = vmatpush1.msra.mxu0 %v441
        %465 = vmatprep.subr.mxu0 %v444
        %466 = vmatpush1.msra.mxu0 %v443
        %467 = vmatprep.subr.mxu0 %v446
        %468 = vmatpush1.msra.mxu0 %v445
        %469 = vmatprep.subr.mxu0 %v448
        %470 = vmatpush1.msra.mxu0 %v447
        %471 = vmatprep.subr.mxu0 0.0
        %472 = vmatpush1.msra.mxu0 0.0
        %473 = vmatprep.subr.mxu0 0.0
        %474 = vmatpush1.msra.mxu0 0.0
        %475 = vmatprep.subr.mxu0 0.0
        %476 = vmatpush1.msra.mxu0 0.0
        %477 = vmatprep.subr.mxu0 0.0
        %478 = vmatpush1.msra.mxu0 0.0
        %479 = vmatprep.subr.mxu0 0.0
        %480 = vmatpush1.msra.mxu0 0.0
        %481 = vmatprep.subr.mxu0 0.0
        %482 = vmatpush1.msra.mxu0 0.0
        %483 = vmatprep.subr.mxu0 0.0
        %484 = vmatpush1.msra.mxu0 0.0
        %485 = vmatprep.subr.mxu0 0.0
        %486 = vmatpush1.msra.mxu0 0.0
        %487 = vmatprep.subr.mxu0 0.0
        %488 = vmatpush1.msra.mxu0 0.0
        %489 = vmatprep.subr.mxu0 0.0
        %490 = vmatpush1.msra.mxu0 0.0
        %491 = vmatprep.subr.mxu0 0.0
        %492 = vmatpush1.msra.mxu0 0.0
        %493 = vmatprep.subr.mxu0 0.0
        %494 = vmatpush1.msra.mxu0 0.0
        %495 = vmatprep.subr.mxu0 0.0
        %496 = vmatpush1.msra.mxu0 0.0
        %497 = vmatprep.subr.mxu0 0.0
        %498 = vmatpush1.msra.mxu0 0.0
        %499 = vmatprep.subr.mxu0 0.0
        %500 = vmatpush1.msra.mxu0 0.0
        %501 = vmatprep.subr.mxu0 0.0
        %502 = vmatpush1.msra.mxu0 0.0
        %503 = vmatprep.subr.mxu0 0.0
        %504 = vmatpush1.msra.mxu0 0.0
        %505 = vmatprep.subr.mxu0 0.0
        %506 = vmatpush1.msra.mxu0 0.0
        %507 = vmatprep.subr.mxu0 0.0
        %508 = vmatpush1.msra.mxu0 0.0
        %509 = vmatprep.subr.mxu0 0.0
        %510 = vmatpush1.msra.mxu0 0.0
        %511 = vmatprep.subr.mxu0 0.0
        %512 = vmatpush1.msra.mxu0 0.0
        %513 = vmatprep.subr.mxu0 0.0
        %514 = vmatpush1.msra.mxu0 0.0
        %515 = vmatprep.subr.mxu0 0.0
        %516 = vmatpush1.msra.mxu0 0.0
        %517 = vmatprep.mubr.f32.mxu0 0.0
        %518 = vmatmul.mubr.f32.gmra.mrb[0].mxu0 %v451
        %v519 = vpop.f32.mrb[0].mxu0
        %v520 = vadd.f32 0.0, %v519
        %v521 = vpop.f32.mrb[0].mxu0
        %v522 = vadd.f32 0.0, %v521
        %523 = vdwg.mxu0
        %vm524 = vcmask 130048
        %v526 = vsel %vm524, %v393, 0
        %528 = vmatprep.subr.mxu0 %v395
        %529 = vmatpush1.msra.mxu0 %v394
        %530 = vmatprep.subr.mxu0 %v397
        %531 = vmatpush1.msra.mxu0 %v396
        %532 = vmatprep.subr.mxu0 %v399
        %533 = vmatpush1.msra.mxu0 %v398
        %534 = vmatprep.subr.mxu0 %v401
        %535 = vmatpush1.msra.mxu0 %v400
        %536 = vmatprep.subr.mxu0 %v403
        %537 = vmatpush1.msra.mxu0 %v402
        %538 = vmatprep.subr.mxu0 %v405
        %539 = vmatpush1.msra.mxu0 %v404
        %540 = vmatprep.subr.mxu0 %v407
        %541 = vmatpush1.msra.mxu0 %v406
        %542 = vmatprep.subr.mxu0 %v409
        %543 = vmatpush1.msra.mxu0 %v408
        %544 = vmatprep.subr.mxu0 %v411
        %545 = vmatpush1.msra.mxu0 %v410
        %546 = vmatprep.subr.mxu0 %v413
        %547 = vmatpush1.msra.mxu0 %v412
        %548 = vmatprep.subr.mxu0 %v415
        %549 = vmatpush1.msra.mxu0 %v414
        %550 = vmatprep.subr.mxu0 %v417
        %551 = vmatpush1.msra.mxu0 %v416
        %552 = vmatprep.subr.mxu0 %v419
        %553 = vmatpush1.msra.mxu0 %v418
        %554 = vmatprep.subr.mxu0 %v421
        %555 = vmatpush1.msra.mxu0 %v420
        %556 = vmatprep.subr.mxu0 %v423
        %557 = vmatpush1.msra.mxu0 %v422
        %558 = vmatprep.subr.mxu0 %v425
        %559 = vmatpush1.msra.mxu0 %v424
        %560 = vmatprep.subr.mxu0 %v427
        %561 = vmatpush1.msra.mxu0 %v426
        %562 = vmatprep.subr.mxu0 %v429
        %563 = vmatpush1.msra.mxu0 %v428
        %564 = vmatprep.subr.mxu0 0.0
        %565 = vmatpush1.msra.mxu0 0.0
        %566 = vmatprep.subr.mxu0 0.0
        %567 = vmatpush1.msra.mxu0 0.0
        %568 = vmatprep.subr.mxu0 0.0
        %569 = vmatpush1.msra.mxu0 0.0
        %570 = vmatprep.subr.mxu0 0.0
        %571 = vmatpush1.msra.mxu0 0.0
        %572 = vmatprep.subr.mxu0 0.0
        %573 = vmatpush1.msra.mxu0 0.0
        %574 = vmatprep.subr.mxu0 0.0
        %575 = vmatpush1.msra.mxu0 0.0
        %576 = vmatprep.subr.mxu0 0.0
        %577 = vmatpush1.msra.mxu0 0.0
        %578 = vmatprep.subr.mxu0 0.0
        %579 = vmatpush1.msra.mxu0 0.0
        %580 = vmatprep.subr.mxu0 0.0
        %581 = vmatpush1.msra.mxu0 0.0
        %582 = vmatprep.subr.mxu0 0.0
        %583 = vmatpush1.msra.mxu0 0.0
        %584 = vmatprep.subr.mxu0 0.0
        %585 = vmatpush1.msra.mxu0 0.0
        %586 = vmatprep.subr.mxu0 0.0
        %587 = vmatpush1.msra.mxu0 0.0
        %588 = vmatprep.subr.mxu0 0.0
        %589 = vmatpush1.msra.mxu0 0.0
        %590 = vmatprep.subr.mxu0 0.0
        %591 = vmatpush1.msra.mxu0 0.0
        %592 = vmatprep.mubr.f32.mxu0 %v526
        %593 = vmatmul.mubr.f32.gmra.mrb[0].mxu0 %v392
        %v594 = vpop.f32.mrb[0].mxu0
        %v595 = vadd.f32 %v520, %v594
        %v596 = vpop.f32.mrb[0].mxu0
        %v597 = vadd.f32 %v522, %v596
        %598 = vdwg.mxu0
        %v599 = vld [vmem:[%s4] sm:$0xff]
        %601 = vset.pattern.permute.xlu0 0
        %602 = vperm.xlu0 %601, %v599
        %v603 = vpop.permute.xlu0 %602
        %v605 = vadd.f32 %v595, %v603
        %v606 = vadd.f32 %v597, %v603
        %v607 = vmax.f32 %v605, 0.0
        %v608 = vmax.f32 %v606, 0.0
        %609 = vst [vmem:[%s390] sm:$0xff] %v607
        %610 = vst [vmem:[%s390 + $0x8] sm:$0xff] %v608
        %s611 = smul.u32 2, %s16
        %p612 = scmp.lt.s32.totalorder %s611, 3
        %s613 = scalar_select %p612, %s611, 3
        %s614 = smul.addr %s613, 8
        %s615 = scalar_lea.vmem %s5, %s614
        // Predicated region
        $region87: #{unet_depth_forward.6} parent=77 // pred_check
          %p616 = pneg %p149
        $region88: #{unet_depth_forward.6} parent=77 // pred_check_branch
          %618 = sbr.rel (%p616) target = $region90
        $region89: #{unet_depth_forward.6} parent=77 // pred_region
          %s619 = smul.u32 2, %s16
        $region90: #{unet_depth_forward.6} parent=77 // pred_fallthru
          _
      $region78: #{unet_depth_forward.6} parent=5 // pred_fallthru
        _
      %p620 = scmp.le.s32.totalorder 2, %s11
      // Predicated region
      $region91: #{unet_depth_forward.6} parent=5 // pred_check
        %p621 = pneg %p620
      $region92: #{unet_depth_forward.6} parent=5 // pred_check_branch
        %623 = sbr.rel (%p621) target = $region94
      $region93: #{unet_depth_forward.6} parent=5 // pred_region
        %s624 = ssub.s32 %s11, 2
        // Predicated region
        $region95: #{unet_depth_forward.6} parent=93 // pred_check
          %p625 = pneg %p155
        $region96: #{unet_depth_forward.6} parent=93 // pred_check_branch
          %627 = sbr.rel (%p625) target = $region98
        $region97: #{unet_depth_forward.6} parent=93 // pred_region
          %s628 = smul.u32 2, %s17
          %p629 = scmp.lt.s32.totalorder %s628, 3
          %s630 = scalar_select %p629, %s628, 3
          %s631 = smul.addr %s630, 8
          %s632 = scalar_lea.vmem %s5, %s631
        $region98: #{unet_depth_forward.6} parent=93 // pred_fallthru
          _
      $region94: #{unet_depth_forward.6} parent=5 // pred_fallthru
        _
    $region6: #{unet_depth_forward.6} parent=1 // loop_footer
      %s15 = sadd.s32 1, %s11
    $region7: #{unet_depth_forward.6} parent=1 // loop_footer_branch
      %10 = sbr.rel target = $region3
    $region8: #{unet_depth_forward.6} parent=1 // loop_exit
      _

// kernel: unet_depth_forward.7
$region0: #{unet_depth_forward.7}
  #allocation0 [shape = 'u32[]', space=smem, size = 0x4, offset = 0x4, fixed_abs, tag = 'smem constant byte address 0x4 - core index']
  #allocation1 [shape = 'u32[144,128]{1,0:T(1,128)}', space=vmem, size = 0x12000, scoped, tag = 'internal scratch']
  %s0 = inlined_call_operand.vmem [shape: f32[8,72], index: 0, kind: input, shape index: {}]
  %s1 = inlined_call_operand.vmem [shape: f32[72,512], index: 1, kind: input, shape index: {}]
  %s2 = inlined_call_operand.vmem [shape: f32[8,1], index: 2, kind: input, shape index: {}]
  %s3 = inlined_call_operand.vmem [shape: f32[8,512], index: 3, kind: output, shape index: {}]
  %s4 = sld [smem:[#allocation0]]
  $region68: #{unet_depth_forward.7} parent=0
    _
  %s6 = ssub.s32 1, %s4
  %s7 = scalar_select 0, %s6, %s4
  $region1: #{unet_depth_forward.7} parent=0
    #allocation2 [shape = 'u8[147456]{0}', space=vmem, size = 0x24000, scoped, tag = 'input window, operand 1']
    loop: start=0, step=1, limit=4
    $region2: #{unet_depth_forward.7} parent=1 // loop_pre_header
      _
    $region3: #{unet_depth_forward.7} parent=1 // loop_header
      %s9 = sphi 0, %s13
      %p10 = scmp.ge.s32.totalorder %s9, 4
      %s17 = sphi 0, %s17
      %s19 = sphi 0, %s17
      %s20 = sphi 0, %s19
      %s34 = sphi 0, %s20
      %s40 = sphi 0, %s42
      %s43 = sphi 0, %s40
      %s44 = sphi 0, %s43
      %s60 = sphi 0, %s44
      %s64 = sphi 0, %s64
      %s66 = sphi 0, %s64
      %s67 = sphi 0, %s66
      %s81 = sphi 0, %s67
      %s87 = sphi 0, %s89
      %s90 = sphi 0, %s87
      %s91 = sphi 0, %s90
      %s107 = sphi 0, %s91
    $region4: #{unet_depth_forward.7} parent=1 // loop_header_branch
      %12 = sbr.rel (%p10) target = $region8
    $region5: #{unet_depth_forward.7} parent=1 // loop_body
      %s14 = ssub.s32 %s9, 1
      %s15 = ssub.s32 %s9, 2
      %s16 = sadd.s32 %s9, 1
      %s18 = sadd.s32 %s17, 1
      %p21 = scmp.eq.s32.totalorder %s9, 1
      %p22 = scmp.ne.s32.totalorder %s17, %s19
      %p23 = scmp.eq.s32.totalorder %s9, 0
      %p24 = por %p22, %p23
      %p25 = scmp.ne.s32.totalorder %s17, %s19
      %p26 = scmp.eq.s32.totalorder %s14, 1
      %p27 = por %p25, %p26
      %p28 = scmp.ne.s32.totalorder %s19, %s20
      %p29 = scmp.eq.s32.totalorder %s14, 0
      %p30 = por %p28, %p29
      %p31 = scmp.ne.s32.totalorder %s19, %s20
      %p32 = scmp.eq.s32.totalorder %s15, 1
      %p33 = por %p31, %p32
      %p35 = scmp.ne.s32.totalorder %s20, %s34
      %p36 = scmp.eq.s32.totalorder %s15, 0
      %p37 = por %p35, %p36
      %s38 = ssub.s32 %s9, %s16
      %p39 = scmp.eq.s32.totalorder %s38, 0
      %s41 = sadd.s32 %s40, 1
      %s42 = scalar_select %p39, %s40, %s41
      %p45 = pneg %p39
      %p46 = scmp.eq.s32.totalorder %s9, 1
      %p47 = por %p45, %p46
      %p48 = scmp.ne.s32.totalorder %s40, %s43
      %p49 = scmp.eq.s32.totalorder %s9, 0
      %p50 = por %p48, %p49
      %p51 = scmp.ne.s32.totalorder %s40, %s43
      %p52 = scmp.eq.s32.totalorder %s14, 1
      %p53 = por %p51, %p52
      %p54 = scmp.ne.s32.totalorder %s43, %s44
      %p55 = scmp.eq.s32.totalorder %s14, 0
      %p56 = por %p54, %p55
      %p57 = scmp.ne.s32.totalorder %s43, %s44
      %p58 = scmp.eq.s32.totalorder %s15, 1
      %p59 = por %p57, %p58
      %p61 = scmp.ne.s32.totalorder %s44, %s60
      %p62 = scmp.eq.s32.totalorder %s15, 0
      %p63 = por %p61, %p62
      %s65 = sadd.s32 %s64, 1
      %p68 = scmp.eq.s32.totalorder %s9, 1
      %p69 = scmp.ne.s32.totalorder %s64, %s66
      %p70 = scmp.eq.s32.totalorder %s9, 0
      %p71 = por %p69, %p70
      %p72 = scmp.ne.s32.totalorder %s64, %s66
      %p73 = scmp.eq.s32.totalorder %s14, 1
      %p74 = por %p72, %p73
      %p75 = scmp.ne.s32.totalorder %s66, %s67
      %p76 = scmp.eq.s32.totalorder %s14, 0
      %p77 = por %p75, %p76
      %p78 = scmp.ne.s32.totalorder %s66, %s67
      %p79 = scmp.eq.s32.totalorder %s15, 1
      %p80 = por %p78, %p79
      %p82 = scmp.ne.s32.totalorder %s67, %s81
      %p83 = scmp.eq.s32.totalorder %s15, 0
      %p84 = por %p82, %p83
      %s85 = ssub.s32 %s9, %s16
      %p86 = scmp.eq.s32.totalorder %s85, 0
      %s88 = sadd.s32 %s87, 1
      %s89 = scalar_select %p86, %s87, %s88
      %p92 = pneg %p86
      %p93 = scmp.eq.s32.totalorder %s9, 1
      %p94 = por %p92, %p93
      %p95 = scmp.ne.s32.totalorder %s87, %s90
      %p96 = scmp.eq.s32.totalorder %s9, 0
      %p97 = por %p95, %p96
      %p98 = scmp.ne.s32.totalorder %s87, %s90
      %p99 = scmp.eq.s32.totalorder %s14, 1
      %p100 = por %p98, %p99
      %p101 = scmp.ne.s32.totalorder %s90, %s91
      %p102 = scmp.eq.s32.totalorder %s14, 0
      %p103 = por %p101, %p102
      %p104 = scmp.ne.s32.totalorder %s90, %s91
      %p105 = scmp.eq.s32.totalorder %s15, 1
      %p106 = por %p104, %p105
      %p108 = scmp.ne.s32.totalorder %s91, %s107
      %p109 = scmp.eq.s32.totalorder %s15, 0
      %p110 = por %p108, %p109
      %p111 = scmp.le.s32.totalorder 1, %s9
      %p112 = scmp.lt.s32.totalorder %s9, 3
      %p113 = pnand %p111, %p112
      %p114 = pneg %p113
      // Predicated region
      $region9: #{unet_depth_forward.7} parent=5 // pred_check
        _
      $region10: #{unet_depth_forward.7} parent=5 // pred_check_branch
        %116 = sbr.rel (%p113) target = $region12
      $region11: #{unet_depth_forward.7} parent=5 // pred_region
        %s117 = ssub.s32 %s9, 1
        // Predicated region
        $region13: #{unet_depth_forward.7} parent=11 // pred_check
          %p118 = pneg %p30
        $region14: #{unet_depth_forward.7} parent=11 // pred_check_branch
          %120 = sbr.rel (%p118) target = $region16
        $region15: #{unet_depth_forward.7} parent=11 // pred_region
          _
        $region16: #{unet_depth_forward.7} parent=11 // pred_fallthru
          _
        // Predicated region
        $region17: #{unet_depth_forward.7} parent=11 // pred_check
          %p121 = pneg %p77
        $region18: #{unet_depth_forward.7} parent=11 // pred_check_branch
          %123 = sbr.rel (%p121) target = $region20
        $region19: #{unet_depth_forward.7} parent=11 // pred_region
          _
        $region20: #{unet_depth_forward.7} parent=11 // pred_fallthru
          _
      $region12: #{unet_depth_forward.7} parent=5 // pred_fallthru
        _
      %p124 = scmp.lt.s32.totalorder %s9, 2
      // Predicated region
      $region21: #{unet_depth_forward.7} parent=5 // pred_check
        %p125 = pneg %p124
      $region22: #{unet_depth_forward.7} parent=5 // pred_check_branch
        %127 = sbr.rel (%p125) target = $region24
      $region23: #{unet_depth_forward.7} parent=5 // pred_region
        // Predicated region
        $region25: #{unet_depth_forward.7} parent=23 // pred_check
          %p128 = pneg %p50
        $region26: #{unet_depth_forward.7} parent=23 // pred_check_branch
          %130 = sbr.rel (%p128) target = $region28
        $region27: #{unet_depth_forward.7} parent=23 // pred_region
          %s131 = sand.u32 %s40, 1
          %s132 = sand.u32 %s40, 1
          %s133 = smul.addr %s132, 144
          %s134 = scalar_lea.vmem [#allocation2], %s133
          %s135 = smul.u32 2, %s9
          %s136 = smul.addr %s135, 8
          %s137 = scalar_lea.vmem %s1, %s136
          // Predicated region
          $region29: #{unet_depth_forward.7} parent=27 // pred_check
            _
          $region30: #{unet_depth_forward.7} parent=27 // pred_check_branch
            %139 = sbr.rel (0) target = $region32
          $region31: #{unet_depth_forward.7} parent=27 // pred_region
            // Predicated region
            $region33: #{unet_depth_forward.7} parent=31 // pred_check
              _
            $region34: #{unet_depth_forward.7} parent=31 // pred_check_branch
              %141 = sbr.rel (0) target = $region36
            $region35: #{unet_depth_forward.7} parent=31 // pred_region
              loop: start=0, step=1, limit=1
              $region37: #{unet_depth_forward.7} parent=35 // loop_pre_header
                _
              $region38: #{unet_depth_forward.7} parent=35 // loop_header
                %s143 = sphi 0, %s147
                %p144 = scmp.ge.s32.totalorder %s143, 1
                %s148 = sphi %s137, %s137
                %s149 = sphi %s134, %s134
              $region39: #{unet_depth_forward.7} parent=35 // loop_header_branch
                %146 = sbr.rel (%p144) target = $region43
              $region40: #{unet_depth_forward.7} parent=35 // loop_body
                %v150 = vld [vmem:[%s148] sm:$0xff]
                %151 = vst [vmem:[%s149] sm:$0xff] %v150
                %v152 = vld [vmem:[%s148 + $0x8] sm:$0xff]
                %153 = vst [vmem:[%s149 + $0x8] sm:$0xff] %v152
                %v154 = vld [vmem:[%s148 + $0x20] sm:$0xff]
                %155 = vst [vmem:[%s149 + $0x10] sm:$0xff] %v154
                %v156 = vld [vmem:[%s148 + $0x28] sm:$0xff]
                %157 = vst [vmem:[%s149 + $0x18] sm:$0xff] %v156
                %v158 = vld [vmem:[%s148 + $0x40] sm:$0xff]
                %159 = vst [vmem:[%s149 + $0x20] sm:$0xff] %v158
                %v160 = vld [vmem:[%s148 + $0x48] sm:$0xff]
                %161 = vst [vmem:[%s149 + $0x28] sm:$0xff] %v160
                %v162 = vld [vmem:[%s148 + $0x60] sm:$0xff]
                %163 = vst [vmem:[%s149 + $0x30] sm:$0xff] %v162
                %v164 = vld [vmem:[%s148 + $0x68] sm:$0xff]
                %165 = vst [vmem:[%s149 + $0x38] sm:$0xff] %v164
                %v166 = vld [vmem:[%s148 + $0x80] sm:$0xff]
                %167 = vst [vmem:[%s149 + $0x40] sm:$0xff] %v166
                %v168 = vld [vmem:[%s148 + $0x88] sm:$0xff]
                %169 = vst [vmem:[%s149 + $0x48] sm:$0xff] %v168
                %v170 = vld [vmem:[%s148 + $0xa0] sm:$0xff]
                %171 = vst [vmem:[%s149 + $0x50] sm:$0xff] %v170
                %v172 = vld [vmem:[%s148 + $0xa8] sm:$0xff]
                %173 = vst [vmem:[%s149 + $0x58] sm:$0xff] %v172
                %v174 = vld [vmem:[%s148 + $0xc0] sm:$0xff]
                %175 = vst [vmem:[%s149 + $0x60] sm:$0xff] %v174
                %v176 = vld [vmem:[%s148 + $0xc8] sm:$0xff]
                %177 = vst [vmem:[%s149 + $0x68] sm:$0xff] %v176
                %v178 = vld [vmem:[%s148 + $0xe0] sm:$0xff]
                %179 = vst [vmem:[%s149 + $0x70] sm:$0xff] %v178
                %v180 = vld [vmem:[%s148 + $0xe8] sm:$0xff]
                %181 = vst [vmem:[%s149 + $0x78] sm:$0xff] %v180
                %v182 = vld [vmem:[%s148 + $0x100] sm:$0xff]
                %183 = vst [vmem:[%s149 + $0x80] sm:$0xff] %v182
                %v184 = vld [vmem:[%s148 + $0x108] sm:$0xff]
                %185 = vst [vmem:[%s149 + $0x88] sm:$0xff] %v184
              $region41: #{unet_depth_forward.7} parent=35 // loop_footer
                %s147 = sadd.s32 1, %s143
              $region42: #{unet_depth_forward.7} parent=35 // loop_footer_branch
                %142 = sbr.rel target = $region38
              $region43: #{unet_depth_forward.7} parent=35 // loop_exit
                _
            $region36: #{unet_depth_forward.7} parent=31 // pred_fallthru
              _
            // Predicated region
            $region44: #{unet_depth_forward.7} parent=31 // pred_check
              _
            $region45: #{unet_depth_forward.7} parent=31 // pred_check_branch
              %187 = sbr.rel target = $region47
            $region46: #{unet_depth_forward.7} parent=31 // pred_region
              _
            $region47: #{unet_depth_forward.7} parent=31 // pred_fallthru
              _
          $region32: #{unet_depth_forward.7} parent=27 // pred_fallthru
            _
          %188 = vnop
        $region28: #{unet_depth_forward.7} parent=23 // pred_fallthru
          _
      $region24: #{unet_depth_forward.7} parent=5 // pred_fallthru
        _
      %p189 = scmp.le.s32.totalorder 1, %s9
      %p190 = scmp.lt.s32.totalorder %s9, 3
      %p191 = pnand %p189, %p190
      %p192 = pneg %p191
      // Predicated region
      $region48: #{unet_depth_forward.7} parent=5 // pred_check
        _
      $region49: #{unet_depth_forward.7} parent=5 // pred_check_branch
        %194 = sbr.rel (%p191) target = $region51
      $region50: #{unet_depth_forward.7} parent=5 // pred_region
        %s195 = ssub.s32 %s9, 1
        %s196 = sand.u32 %s43, 1
        %s197 = sand.u32 %s43, 1
        %s198 = smul.addr %s197, 144
        %s199 = scalar_lea.vmem [#allocation2], %s198
        // Predicated region
        $region52: #{unet_depth_forward.7} parent=50 // pred_check
          %p200 = pneg %p56
        $region53: #{unet_depth_forward.7} parent=50 // pred_check_branch
          %202 = sbr.rel (%p200) target = $region55
        $region54: #{unet_depth_forward.7} parent=50 // pred_region
          _
        $region55: #{unet_depth_forward.7} parent=50 // pred_fallthru
          _
        %p203 = pneg %p30
        %p204 = pneg %p27
        %s205 = sand.u32 %s43, 1
        %s206 = sand.u32 %s43, 1
        %s207 = smul.addr %s206, 144
        %s208 = scalar_lea.vmem [#allocation2], %s207
        %p209 = pneg %p56
        %p210 = pneg %p53
        %p211 = pneg %p77
        %p212 = pneg %p74
        %p213 = pneg %p103
        %p214 = pneg %p100
        %s215 = smul.u32 2, %s14
        %p216 = scmp.lt.s32.totalorder %s215, 3
        %s217 = scalar_select %p216, %s215, 3
        %s218 = smul.addr %s217, 8
        %s219 = scalar_lea.vmem %s3, %s218
        %s220 = smul.u32 2, %s14
        %s221 = smul.u32 2, %s14
        %p222 = scmp.lt.s32.totalorder %s221, 3
        %s223 = scalar_select %p222, %s221, 3
        %s224 = smul.addr %s223, 8
        %s225 = scalar_lea.vmem %s3, %s224
        %s226 = smul.u32 2, %s14
        %v227 = vld [vmem:[%s0] sm:$0xff]
        %v228 = vld [vmem:[%s199] sm:$0xff]
        %v229 = vld [vmem:[%s199 + $0x8] sm:$0xff]
        %v230 = vld [vmem:[%s199 + $0x10] sm:$0xff]
        %v231 = vld [vmem:[%s199 + $0x18] sm:$0xff]
        %v232 = vld [vmem:[%s199 + $0x20] sm:$0xff]
        %v233 = vld [vmem:[%s199 + $0x28] sm:$0xff]
        %v234 = vld [vmem:[%s199 + $0x30] sm:$0xff]
        %v235 = vld [vmem:[%s199 + $0x38] sm:$0xff]
        %v236 = vld [vmem:[%s199 + $0x40] sm:$0xff]
        %v237 = vld [vmem:[%s199 + $0x48] sm:$0xff]
        %v238 = vld [vmem:[%s199 + $0x50] sm:$0xff]
        %v239 = vld [vmem:[%s199 + $0x58] sm:$0xff]
        %v240 = vld [vmem:[%s199 + $0x60] sm:$0xff]
        %v241 = vld [vmem:[%s199 + $0x68] sm:$0xff]
        %v242 = vld [vmem:[%s199 + $0x70] sm:$0xff]
        %v243 = vld [vmem:[%s199 + $0x78] sm:$0xff]
        %v244 = vld [vmem:[%s199 + $0x80] sm:$0xff]
        %v245 = vld [vmem:[%s199 + $0x88] sm:$0xff]
        %v246 = vld [vmem:[%s2] sm:$0xff]
        %248 = vset.pattern.permute.xlu0 0
        %249 = vperm.xlu0 %248, %v246
        %v250 = vpop.permute.xlu0 %249
        %vm252 = vcmask 588800
        %v254 = vsel %vm252, %v227, 0
        %256 = vmatprep.subr.mxu0 %v229
        %257 = vmatpush1.msra.mxu0 %v228
        %258 = vmatprep.subr.mxu0 %v231
        %259 = vmatpush1.msra.mxu0 %v230
        %260 = vmatprep.subr.mxu0 %v233
        %261 = vmatpush1.msra.mxu0 %v232
        %262 = vmatprep.subr.mxu0 %v235
        %263 = vmatpush1.msra.mxu0 %v234
        %264 = vmatprep.subr.mxu0 %v237
        %265 = vmatpush1.msra.mxu0 %v236
        %266 = vmatprep.subr.mxu0 %v239
        %267 = vmatpush1.msra.mxu0 %v238
        %268 = vmatprep.subr.mxu0 %v241
        %269 = vmatpush1.msra.mxu0 %v240
        %270 = vmatprep.subr.mxu0 %v243
        %271 = vmatpush1.msra.mxu0 %v242
        %272 = vmatprep.subr.mxu0 %v245
        %273 = vmatpush1.msra.mxu0 %v244
        %274 = vmatprep.subr.mxu0 0.0
        %275 = vmatpush1.msra.mxu0 0.0
        %276 = vmatprep.subr.mxu0 0.0
        %277 = vmatpush1.msra.mxu0 0.0
        %278 = vmatprep.subr.mxu0 0.0
        %279 = vmatpush1.msra.mxu0 0.0
        %280 = vmatprep.subr.mxu0 0.0
        %281 = vmatpush1.msra.mxu0 0.0
        %282 = vmatprep.subr.mxu0 0.0
        %283 = vmatpush1.msra.mxu0 0.0
        %284 = vmatprep.subr.mxu0 0.0
        %285 = vmatpush1.msra.mxu0 0.0
        %286 = vmatprep.subr.mxu0 0.0
        %287 = vmatpush1.msra.mxu0 0.0
        %288 = vmatprep.subr.mxu0 0.0
        %289 = vmatpush1.msra.mxu0 0.0
        %290 = vmatprep.subr.mxu0 0.0
        %291 = vmatpush1.msra.mxu0 0.0
        %292 = vmatprep.subr.mxu0 0.0
        %293 = vmatpush1.msra.mxu0 0.0
        %294 = vmatprep.subr.mxu0 0.0
        %295 = vmatpush1.msra.mxu0 0.0
        %296 = vmatprep.subr.mxu0 0.0
        %297 = vmatpush1.msra.mxu0 0.0
        %298 = vmatprep.subr.mxu0 0.0
        %299 = vmatpush1.msra.mxu0 0.0
        %300 = vmatprep.subr.mxu0 0.0
        %301 = vmatpush1.msra.mxu0 0.0
        %302 = vmatprep.subr.mxu0 0.0
        %303 = vmatpush1.msra.mxu0 0.0
        %304 = vmatprep.subr.mxu0 0.0
        %305 = vmatpush1.msra.mxu0 0.0
        %306 = vmatprep.subr.mxu0 0.0
        %307 = vmatpush1.msra.mxu0 0.0
        %308 = vmatprep.subr.mxu0 0.0
        %309 = vmatpush1.msra.mxu0 0.0
        %310 = vmatprep.subr.mxu0 0.0
        %311 = vmatpush1.msra.mxu0 0.0
        %312 = vmatprep.subr.mxu0 0.0
        %313 = vmatpush1.msra.mxu0 0.0
        %314 = vmatprep.subr.mxu0 0.0
        %315 = vmatpush1.msra.mxu0 0.0
        %316 = vmatprep.subr.mxu0 0.0
        %317 = vmatpush1.msra.mxu0 0.0
        %318 = vmatprep.subr.mxu0 0.0
        %319 = vmatpush1.msra.mxu0 0.0
        %320 = vmatprep.mubr.f32.mxu0 0.0
        %321 = vmatmul.mubr.f32.gmra.mrb[0].mxu0 %v254
        %v322 = vpop.f32.mrb[0].mxu0
        %v323 = vadd.f32 %v250, %v322
        %v324 = vpop.f32.mrb[0].mxu0
        %v325 = vadd.f32 %v250, %v324
        %326 = vdwg.mxu0
        %v327 = vadd.f32 %v323, 3.0
        %v328 = vadd.f32 %v325, 3.0
        %v329 = vmul.f32 %v327, 1.442695
        %v330 = vpow.pop %v329
        %v331 = vmul.f32 %v328, 1.442695
        %v332 = vpow.pop %v331
        %333 = vst [vmem:[%s225] sm:$0xff] %v330
        %334 = vst [vmem:[%s225 + $0x8] sm:$0xff] %v332
        %s335 = smul.u32 2, %s14
        %p336 = scmp.lt.s32.totalorder %s335, 3
        %s337 = scalar_select %p336, %s335, 3
        %s338 = smul.addr %s337, 8
        %s339 = scalar_lea.vmem %s3, %s338
        // Predicated region
        $region56: #{unet_depth_forward.7} parent=50 // pred_check
          %p340 = pneg %p100
        $region57: #{unet_depth_forward.7} parent=50 // pred_check_branch
          %342 = sbr.rel (%p340) target = $region59
        $region58: #{unet_depth_forward.7} parent=50 // pred_region
          %s343 = smul.u32 2, %s14
        $region59: #{unet_depth_forward.7} parent=50 // pred_fallthru
          _
      $region51: #{unet_depth_forward.7} parent=5 // pred_fallthru
        _
      %p344 = scmp.le.s32.totalorder 2, %s9
      // Predicated region
      $region60: #{unet_depth_forward.7} parent=5 // pred_check
        %p345 = pneg %p344
      $region61: #{unet_depth_forward.7} parent=5 // pred_check_branch
        %347 = sbr.rel (%p345) target = $region63
      $region62: #{unet_depth_forward.7} parent=5 // pred_region
        %s348 = ssub.s32 %s9, 2
        // Predicated region
        $region64: #{unet_depth_forward.7} parent=62 // pred_check
          %p349 = pneg %p106
        $region65: #{unet_depth_forward.7} parent=62 // pred_check_branch
          %351 = sbr.rel (%p349) target = $region67
        $region66: #{unet_depth_forward.7} parent=62 // pred_region
          %s352 = smul.u32 2, %s15
          %p353 = scmp.lt.s32.totalorder %s352, 3
          %s354 = scalar_select %p353, %s352, 3
          %s355 = smul.addr %s354, 8
          %s356 = scalar_lea.vmem %s3, %s355
        $region67: #{unet_depth_forward.7} parent=62 // pred_fallthru
          _
      $region63: #{unet_depth_forward.7} parent=5 // pred_fallthru
        _
    $region6: #{unet_depth_forward.7} parent=1 // loop_footer
      %s13 = sadd.s32 1, %s9
    $region7: #{unet_depth_forward.7} parent=1 // loop_footer_branch
      %8 = sbr.rel target = $region3
    $region8: #{unet_depth_forward.7} parent=1 // loop_exit
      _

</llo_original>
